<compile_context>
chip_gen: v7x
topology: tpu7x:2x2x1
jax: 0.10.0
libtpu: 0.0.40
codegen_flags: <defaults>
</compile_context>

<pallas_src>
import functools

import jax
import jax.numpy as jnp
import numpy as np
from jax.experimental import pallas as pl
from jax.experimental.pallas import tpu as pltpu


def _round_up(x, m):
    return (x + m - 1) // m * m


# ----------------------------------------------------------------------------
# Kernel: processes ONE batch tile through ALL layers (activations never leave VMEM).
# refs = (x_ref, <per-layer params...>, out_ref)
# per-layer params: W (Din_pad, Dout_pad)  [bf16 or f32], b (1, Dout_pad) f32
#                   [+ gamma (1, Dout_pad), beta (1, Dout_pad) f32 if use_ln]
# ----------------------------------------------------------------------------
def _residual_mlp_kernel(x_ref, *refs, layer_meta, eps):
    out_ref = refs[-1]
    params = refs[:-1]

    h = x_ref[...].astype(jnp.float32)   # residual stream kept in f32
    p = 0
    for meta in layer_meta:
        w_ref = params[p]
        b_ref = params[p + 1]
        p += 2
        if meta["use_ln"]:
            g_ref = params[p]
            be_ref = params[p + 1]
            p += 2

        # ---- linear (MXU): operands in the weight's storage dtype, f32 accumulation ----
        w = w_ref[...]
        y = jnp.dot(h.astype(w.dtype), w, preferred_element_type=jnp.float32)
        y = y + b_ref[...]

        # ---- LayerNorm over the real (unpadded) feature lanes ----
        if meta["use_ln"]:
            d = meta["d_out"]
            inv_d = 1.0 / d
            # padded lanes of y are exactly 0 (zero-padded inputs/weights/bias) -> sum is exact
            mean = jnp.sum(y, axis=-1, keepdims=True) * inv_d
            if meta["d_out_pad"] != d:
                lane = jax.lax.broadcasted_iota(jnp.int32, y.shape, 1)
                yc = jnp.where(lane < d, y - mean, 0.0)       # mask padded lanes out of variance
            else:
                yc = y - mean
            var = jnp.sum(yc * yc, axis=-1, keepdims=True) * inv_d   # centered -> never negative
            y = yc * jax.lax.rsqrt(var + eps)
            # padded lanes of yc are 0, and beta is zero-padded -> padded lanes stay exactly 0
            y = y * g_ref[...] + be_ref[...]

        # ---- activation (ReLU hidden layers, Identity output layer) ----
        if meta["use_relu"]:
            y = jnp.maximum(y, 0.0)

        # dropout = 0.0 / eval mode -> identity.

        # ---- residual (LinearBlock) ----
        if meta["residual"]:
            y = h + y

        h = y

    out_ref[...] = h.astype(out_ref.dtype)


# ----------------------------------------------------------------------------
# One-time parameter packing: pad to TPU-friendly shapes, cast weights to bf16.
# Do this ONCE, not per forward call.
# ----------------------------------------------------------------------------
def prepare_residual_mlp(params, *, param_dtype=jnp.bfloat16):
    d_in = params[0]["w"].shape[0]
    d_in_pad = _round_up(d_in, 128)

    flat_params = []
    param_block_shapes = []
    layer_meta = []
    param_bytes = 0
    flops_per_row = 0
    num_ln = 0
    max_pad_width = d_in_pad

    cur_in, cur_in_pad = d_in, d_in_pad
    for layer in params:
        w = layer["w"]
        din, dout = w.shape
        assert din == cur_in, "layer input width mismatch"
        dout_pad = _round_up(dout, 128)
        max_pad_width = max(max_pad_width, dout_pad)

        # weights: zero-pad, then store in (default) bf16 -> half DMA bytes / VMEM residency,
        # and no per-tile in-kernel cast of the RHS.
        w_p = (jnp.zeros((cur_in_pad, dout_pad), jnp.float32)
               .at[:din, :dout].set(w.astype(jnp.float32))
               .astype(param_dtype))
        b = layer["b"] if layer["b"] is not None else jnp.zeros((dout,), jnp.float32)
        b_p = jnp.zeros((1, dout_pad), jnp.float32).at[0, :dout].set(b.astype(jnp.float32))
        flat_params += [w_p, b_p]
        param_block_shapes += [(cur_in_pad, dout_pad), (1, dout_pad)]

        if layer["use_ln"]:
            # gamma/beta zero-padded so padded lanes remain exactly zero after affine LN.
            g_p = jnp.zeros((1, dout_pad), jnp.float32).at[0, :dout].set(layer["gamma"])
            be_p = jnp.zeros((1, dout_pad), jnp.float32).at[0, :dout].set(layer["beta"])
            flat_params += [g_p, be_p]
            param_block_shapes += [(1, dout_pad), (1, dout_pad)]
            num_ln += 1

        layer_meta.append(dict(d_out=dout, d_out_pad=dout_pad,
                               use_ln=layer["use_ln"],
                               use_relu=layer["use_relu"],
                               residual=layer["residual"]))
        flops_per_row += 2 * cur_in_pad * dout_pad
        cur_in, cur_in_pad = dout, dout_pad

    for a in flat_params:
        param_bytes += a.size * a.dtype.itemsize

    return dict(
        d_in=d_in, d_in_pad=d_in_pad,
        d_out=cur_in, d_out_pad=cur_in_pad,
        max_pad_width=max_pad_width,
        flat_params=flat_params,
        param_block_shapes=param_block_shapes,
        layer_meta=layer_meta,
        param_bytes=param_bytes,
        flops_per_row=flops_per_row,
        num_ln=num_ln,
    )


# ----------------------------------------------------------------------------
# Forward wrapper: batch padding/tiling + fused pallas_call.
# NOTE: call eagerly (not under jax.jit) so the Buffered(1) fallback can engage.
# ----------------------------------------------------------------------------
def residual_mlp_forward(x, packed, *, eps=1e-5, batch_tile=512,
                         out_dtype=jnp.float32, prefer_megacore_split=True,
                         single_buffer_params=True):
    batch, d_in = x.shape
    assert d_in == packed["d_in"]
    d_in_pad = packed["d_in_pad"]
    d_out = packed["d_out"]
    d_out_pad = packed["d_out_pad"]

    # --- batch: pad to a multiple of 8 sublanes; tile so the parallel grid axis has
    #     at least 2 steps when the batch allows (keeps both v7x TCs busy). ---
    batch_pad = _round_up(batch, 8)
    tb = min(batch_tile, batch_pad)
    if prefer_megacore_split and batch_pad > 8 and batch_pad <= batch_tile:
        tb = _round_up(pl.cdiv(batch_pad, 2), 8)
    batch_pad = _round_up(batch_pad, tb)
    grid = (batch_pad // tb,)

    # --- input: zero-pad features to a multiple of 128 lanes ---
    # TODO(synk): accept already-padded inputs/outputs to skip this pad + the return slice.
    x_p = (jnp.zeros((batch_pad, d_in_pad), jnp.float32)
           .at[:batch, :d_in].set(x.astype(jnp.float32)))

    # --- VMEM budget & cost estimate ---
    param_buf = 1 if single_buffer_params else 2
    act_bytes = tb * packed["max_pad_width"] * 4
    vmem_needed = (packed["param_bytes"] * param_buf
                   + 2 * tb * d_in_pad * 4        # double-buffered input tile
                   + 2 * tb * d_out_pad * 4       # double-buffered output tile
                   + 6 * act_bytes)               # headroom for intermediates/casts
    vmem_limit = int(min(max(2 * vmem_needed, 32 * 1024 * 1024), 127 * 1024 * 1024))

    flops = packed["flops_per_row"] * batch_pad
    transcendentals = packed["num_ln"] * batch_pad
    bytes_accessed = (x_p.size * 4 + packed["param_bytes"]
                      + batch_pad * d_out_pad * jnp.dtype(out_dtype).itemsize)

    kernel = functools.partial(_residual_mlp_kernel,
                               layer_meta=packed["layer_meta"], eps=eps)

    def build(single_buffer):
        in_specs = [pl.BlockSpec((tb, d_in_pad), lambda i: (i, 0))]
        for shape in packed["param_block_shapes"]:
            if single_buffer:
                # constant block index across the grid -> one resident copy is enough
                in_specs.append(pl.BlockSpec(shape, lambda i: (0, 0),
                                             pipeline_mode=pl.Buffered(1)))
            else:
                in_specs.append(pl.BlockSpec(shape, lambda i: (0, 0)))
        return pl.pallas_call(
            kernel,
            out_shape=jax.ShapeDtypeStruct((batch_pad, d_out_pad), out_dtype),
            grid=grid,
            in_specs=in_specs,
            out_specs=pl.BlockSpec((tb, d_out_pad), lambda i: (i, 0)),
            compiler_params=pltpu.CompilerParams(
                dimension_semantics=("parallel",),   # shards batch tiles across TCs on v7x
                vmem_limit_bytes=vmem_limit),
            cost_estimate=pl.CostEstimate(flops=flops,
                                          transcendentals=transcendentals,
                                          bytes_accessed=bytes_accessed),
        )

    if single_buffer_params:
        try:
            out_pad = build(True)(x_p, *packed["flat_params"])
        except Exception:
            # older JAX / Mosaic without Buffered(1) support: fall back to default buffering
            out_pad = build(False)(x_p, *packed["flat_params"])
    else:
        out_pad = build(False)(x_p, *packed["flat_params"])

    return out_pad[:batch, :d_out]


# ----------------------------------------------------------------------------
# Parameter init mirroring ResidualMLP.__init__ structure.
# ----------------------------------------------------------------------------
def init_residual_mlp_params(key, sizes, use_biases=True, use_layer_norm=True,
                             init_scaling=0.1):
    assert len(sizes) >= 2
    n_layers = len(sizes) - 1
    params = []
    for i in range(n_layers):
        d_in, d_out = sizes[i], sizes[i + 1]
        is_last = (i == n_layers - 1)
        residual = (not is_last) and (i > 0)           # LinearBlock for middle layers
        if residual:
            assert sizes[i] == sizes[i + 1]
        key, kw, kb = jax.random.split(key, 3)
        w = init_scaling * jax.random.normal(kw, (d_in, d_out), jnp.float32)
        b = (init_scaling * jax.random.normal(kb, (d_out,), jnp.float32)
             if use_biases else None)
        use_ln = use_layer_norm and not is_last        # output Linear: no LayerNorm
        params.append(dict(
            w=w, b=b,
            gamma=jnp.ones((d_out,), jnp.float32) if use_ln else None,
            beta=jnp.zeros((d_out,), jnp.float32) if use_ln else None,
            use_ln=use_ln,
            use_relu=not is_last,                      # ReLU hidden, Identity output
            residual=residual,
        ))
    return params


# ----------------------------------------------------------------------------
# Pure-JAX reference for validation.
# ----------------------------------------------------------------------------
def residual_mlp_reference(x, params, eps=1e-5, param_dtype=jnp.float32):
    h = x.astype(jnp.float32)
    for p in params:
        y = jnp.dot(h.astype(param_dtype), p["w"].astype(param_dtype),
                    preferred_element_type=jnp.float32)
        if p["b"] is not None:
            y = y + p["b"]
        if p["use_ln"]:
            mean = jnp.mean(y, axis=-1, keepdims=True)
            var = jnp.mean(jnp.square(y - mean), axis=-1, keepdims=True)
            y = (y - mean) * jax.lax.rsqrt(var + eps)
            y = y * p["gamma"] + p["beta"]
        if p["use_relu"]:
            y = jnp.maximum(y, 0.0)
        if p["residual"]:
            y = h + y
        h = y
    return h


if __name__ == "__main__":
    key = jax.random.PRNGKey(0)

    # first Linear (32->64, LN+ReLU), two residual LinearBlocks (64), output Linear (64->16)
    sizes = [32, 64, 64, 64, 16]
    batch = 8

    key, kx, kp = jax.random.split(key, 3)
    x = jax.random.normal(kx, (batch, sizes[0]), jnp.float32)
    params = init_residual_mlp_params(kp, sizes, init_scaling=0.1)

    # --- default path: bf16 matmul operands (native MXU on v5e/v6e/v7x), f32 accumulation ---
    packed_bf16 = prepare_residual_mlp(params, param_dtype=jnp.bfloat16)
    out_bf16 = jax.block_until_ready(residual_mlp_forward(x, packed_bf16))
    ref_bf16 = residual_mlp_reference(x, params, param_dtype=jnp.bfloat16)
    np.testing.assert_allclose(np.asarray(out_bf16), np.asarray(ref_bf16),
                               rtol=5e-2, atol=5e-2)

    # --- strict numerical check with f32 operands ---
    packed_f32 = prepare_residual_mlp(params, param_dtype=jnp.float32)
    out_f32 = jax.block_until_ready(residual_mlp_forward(x, packed_f32))
    ref_f32 = residual_mlp_reference(x, params, param_dtype=jnp.float32)
    np.testing.assert_allclose(np.asarray(out_f32), np.asarray(ref_f32),
                               rtol=1e-4, atol=1e-5)

    # --- multi-tile grid path (batch split across >=2 grid steps, padded rows/lanes) ---
    key, kx2 = jax.random.split(key)
    x2 = jax.random.normal(kx2, (200, sizes[0]), jnp.float32)
    out2 = jax.block_until_ready(residual_mlp_forward(x2, packed_bf16))
    ref2 = residual_mlp_reference(x2, params, param_dtype=jnp.bfloat16)
    np.testing.assert_allclose(np.asarray(out2), np.asarray(ref2), rtol=5e-2, atol=5e-2)

    print("KERNEL_OK")
</pallas_src>

<mosaic_0001>
module attributes {stable_mosaic.version = 11 : i64} {
  func.func @_residual_mlp_kernel(%arg0: i32, %arg1: memref<8x128xf32, #tpu.memory_space<vmem>>, %arg2: memref<128x128xbf16, #tpu.memory_space<vmem>>, %arg3: memref<1x128xf32, #tpu.memory_space<vmem>>, %arg4: memref<1x128xf32, #tpu.memory_space<vmem>>, %arg5: memref<1x128xf32, #tpu.memory_space<vmem>>, %arg6: memref<128x128xbf16, #tpu.memory_space<vmem>>, %arg7: memref<1x128xf32, #tpu.memory_space<vmem>>, %arg8: memref<1x128xf32, #tpu.memory_space<vmem>>, %arg9: memref<1x128xf32, #tpu.memory_space<vmem>>, %arg10: memref<128x128xbf16, #tpu.memory_space<vmem>>, %arg11: memref<1x128xf32, #tpu.memory_space<vmem>>, %arg12: memref<1x128xf32, #tpu.memory_space<vmem>>, %arg13: memref<1x128xf32, #tpu.memory_space<vmem>>, %arg14: memref<128x128xbf16, #tpu.memory_space<vmem>>, %arg15: memref<1x128xf32, #tpu.memory_space<vmem>>, %arg16: memref<8x128xf32, #tpu.memory_space<vmem>>) attributes {dimension_semantics = [#tpu.dimension_semantics<parallel>], iteration_bounds = array<i64: 1>, scalar_prefetch = 0 : i64, scratch_operands = 0 : i64, tpu.core_type = #tpu.core_type<tc>, window_params = [{transform_indices = @transform_0, window_bounds = array<i64: 8, 128>}, {pipeline_mode = #tpu.pipeline_mode<synchronous>, transform_indices = @transform_1, window_bounds = array<i64: 128, 128>}, {pipeline_mode = #tpu.pipeline_mode<synchronous>, transform_indices = @transform_2, window_bounds = array<i64: 1, 128>}, {pipeline_mode = #tpu.pipeline_mode<synchronous>, transform_indices = @transform_3, window_bounds = array<i64: 1, 128>}, {pipeline_mode = #tpu.pipeline_mode<synchronous>, transform_indices = @transform_4, window_bounds = array<i64: 1, 128>}, {pipeline_mode = #tpu.pipeline_mode<synchronous>, transform_indices = @transform_5, window_bounds = array<i64: 128, 128>}, {pipeline_mode = #tpu.pipeline_mode<synchronous>, transform_indices = @transform_6, window_bounds = array<i64: 1, 128>}, {pipeline_mode = #tpu.pipeline_mode<synchronous>, transform_indices = @transform_7, window_bounds = array<i64: 1, 128>}, {pipeline_mode = #tpu.pipeline_mode<synchronous>, transform_indices = @transform_8, window_bounds = array<i64: 1, 128>}, {pipeline_mode = #tpu.pipeline_mode<synchronous>, transform_indices = @transform_9, window_bounds = array<i64: 128, 128>}, {pipeline_mode = #tpu.pipeline_mode<synchronous>, transform_indices = @transform_10, window_bounds = array<i64: 1, 128>}, {pipeline_mode = #tpu.pipeline_mode<synchronous>, transform_indices = @transform_11, window_bounds = array<i64: 1, 128>}, {pipeline_mode = #tpu.pipeline_mode<synchronous>, transform_indices = @transform_12, window_bounds = array<i64: 1, 128>}, {pipeline_mode = #tpu.pipeline_mode<synchronous>, transform_indices = @transform_13, window_bounds = array<i64: 128, 128>}, {pipeline_mode = #tpu.pipeline_mode<synchronous>, transform_indices = @transform_14, window_bounds = array<i64: 1, 128>}, {transform_indices = @transform_15, window_bounds = array<i64: 8, 128>}]} {
    %c0 = arith.constant 0 : index
    %c0_0 = arith.constant 0 : index
    %0 = vector.load %arg1[%c0, %c0_0] : memref<8x128xf32, #tpu.memory_space<vmem>>, vector<8x128xf32>
    %c0_1 = arith.constant 0 : index
    %c0_2 = arith.constant 0 : index
    %1 = vector.load %arg2[%c0_1, %c0_2] : memref<128x128xbf16, #tpu.memory_space<vmem>>, vector<128x128xbf16>
    %2 = arith.truncf %0 : vector<8x128xf32> to vector<8x128xbf16>
    %cst = arith.constant dense<0.000000e+00> : vector<8x128xf32>
    %3 = tpu.matmul %2, %1, %cst {dimension_numbers = #tpu.dot_dimension_numbers<[1], [0], [0], [1], [0, 0, 1, 1], [], []>} : vector<8x128xbf16>, vector<128x128xbf16>, vector<8x128xf32> -> vector<8x128xf32>
    %c0_3 = arith.constant 0 : index
    %c0_4 = arith.constant 0 : index
    %4 = vector.load %arg3[%c0_3, %c0_4] : memref<1x128xf32, #tpu.memory_space<vmem>>, vector<1x128xf32>
    %5 = vector.broadcast %4 : vector<1x128xf32> to vector<8x128xf32>
    %6 = arith.addf %3, %5 : vector<8x128xf32>
    %cst_5 = arith.constant dense<0.000000e+00> : vector<8xf32>
    %7 = vector.multi_reduction <add>, %6, %cst_5 [1] : vector<8x128xf32> to vector<8xf32>
    %8 = vector.shape_cast %7 : vector<8xf32> to vector<8x1xf32>
    %cst_6 = arith.constant 1.562500e-02 : f32
    %9 = vector.broadcast %cst_6 : f32 to vector<8x1xf32>
    %10 = arith.mulf %8, %9 : vector<8x1xf32>
    %11 = tpu.iota {dimensions = array<i32: 1>} : vector<8x128xi32>
    %c64_i32 = arith.constant 64 : i32
    %12 = vector.broadcast %c64_i32 : i32 to vector<8x128xi32>
    %13 = arith.cmpi slt, %11, %12 : vector<8x128xi32>
    %14 = vector.broadcast %10 : vector<8x1xf32> to vector<8x128xf32>
    %15 = arith.subf %6, %14 : vector<8x128xf32>
    %cst_7 = arith.constant 0.000000e+00 : f32
    %16 = vector.broadcast %cst_7 : f32 to vector<8x128xf32>
    %17 = arith.select %13, %15, %16 : vector<8x128xi1>, vector<8x128xf32>
    %18 = arith.mulf %17, %17 : vector<8x128xf32>
    %cst_8 = arith.constant dense<0.000000e+00> : vector<8xf32>
    %19 = vector.multi_reduction <add>, %18, %cst_8 [1] : vector<8x128xf32> to vector<8xf32>
    %20 = vector.shape_cast %19 : vector<8xf32> to vector<8x1xf32>
    %cst_9 = arith.constant 1.562500e-02 : f32
    %21 = vector.broadcast %cst_9 : f32 to vector<8x1xf32>
    %22 = arith.mulf %20, %21 : vector<8x1xf32>
    %cst_10 = arith.constant 9.99999974E-6 : f32
    %23 = vector.broadcast %cst_10 : f32 to vector<8x1xf32>
    %24 = arith.addf %22, %23 : vector<8x1xf32>
    %25 = math.rsqrt %24 : vector<8x1xf32>
    %26 = vector.broadcast %25 : vector<8x1xf32> to vector<8x128xf32>
    %27 = arith.mulf %17, %26 : vector<8x128xf32>
    %c0_11 = arith.constant 0 : index
    %c0_12 = arith.constant 0 : index
    %28 = vector.load %arg4[%c0_11, %c0_12] : memref<1x128xf32, #tpu.memory_space<vmem>>, vector<1x128xf32>
    %29 = vector.broadcast %28 : vector<1x128xf32> to vector<8x128xf32>
    %30 = arith.mulf %27, %29 : vector<8x128xf32>
    %c0_13 = arith.constant 0 : index
    %c0_14 = arith.constant 0 : index
    %31 = vector.load %arg5[%c0_13, %c0_14] : memref<1x128xf32, #tpu.memory_space<vmem>>, vector<1x128xf32>
    %32 = vector.broadcast %31 : vector<1x128xf32> to vector<8x128xf32>
    %33 = arith.addf %30, %32 : vector<8x128xf32>
    %cst_15 = arith.constant 0.000000e+00 : f32
    %34 = vector.broadcast %cst_15 : f32 to vector<8x128xf32>
    %35 = arith.maximumf %33, %34 : vector<8x128xf32>
    %c0_16 = arith.constant 0 : index
    %c0_17 = arith.constant 0 : index
    %36 = vector.load %arg6[%c0_16, %c0_17] : memref<128x128xbf16, #tpu.memory_space<vmem>>, vector<128x128xbf16>
    %37 = arith.truncf %35 : vector<8x128xf32> to vector<8x128xbf16>
    %cst_18 = arith.constant dense<0.000000e+00> : vector<8x128xf32>
    %38 = tpu.matmul %37, %36, %cst_18 {dimension_numbers = #tpu.dot_dimension_numbers<[1], [0], [0], [1], [0, 0, 1, 1], [], []>} : vector<8x128xbf16>, vector<128x128xbf16>, vector<8x128xf32> -> vector<8x128xf32>
    %c0_19 = arith.constant 0 : index
    %c0_20 = arith.constant 0 : index
    %39 = vector.load %arg7[%c0_19, %c0_20] : memref<1x128xf32, #tpu.memory_space<vmem>>, vector<1x128xf32>
    %40 = vector.broadcast %39 : vector<1x128xf32> to vector<8x128xf32>
    %41 = arith.addf %38, %40 : vector<8x128xf32>
    %cst_21 = arith.constant dense<0.000000e+00> : vector<8xf32>
    %42 = vector.multi_reduction <add>, %41, %cst_21 [1] : vector<8x128xf32> to vector<8xf32>
    %43 = vector.shape_cast %42 : vector<8xf32> to vector<8x1xf32>
    %cst_22 = arith.constant 1.562500e-02 : f32
    %44 = vector.broadcast %cst_22 : f32 to vector<8x1xf32>
    %45 = arith.mulf %43, %44 : vector<8x1xf32>
    %46 = tpu.iota {dimensions = array<i32: 1>} : vector<8x128xi32>
    %c64_i32_23 = arith.constant 64 : i32
    %47 = vector.broadcast %c64_i32_23 : i32 to vector<8x128xi32>
    %48 = arith.cmpi slt, %46, %47 : vector<8x128xi32>
    %49 = vector.broadcast %45 : vector<8x1xf32> to vector<8x128xf32>
    %50 = arith.subf %41, %49 : vector<8x128xf32>
    %cst_24 = arith.constant 0.000000e+00 : f32
    %51 = vector.broadcast %cst_24 : f32 to vector<8x128xf32>
    %52 = arith.select %48, %50, %51 : vector<8x128xi1>, vector<8x128xf32>
    %53 = arith.mulf %52, %52 : vector<8x128xf32>
    %cst_25 = arith.constant dense<0.000000e+00> : vector<8xf32>
    %54 = vector.multi_reduction <add>, %53, %cst_25 [1] : vector<8x128xf32> to vector<8xf32>
    %55 = vector.shape_cast %54 : vector<8xf32> to vector<8x1xf32>
    %cst_26 = arith.constant 1.562500e-02 : f32
    %56 = vector.broadcast %cst_26 : f32 to vector<8x1xf32>
    %57 = arith.mulf %55, %56 : vector<8x1xf32>
    %cst_27 = arith.constant 9.99999974E-6 : f32
    %58 = vector.broadcast %cst_27 : f32 to vector<8x1xf32>
    %59 = arith.addf %57, %58 : vector<8x1xf32>
    %60 = math.rsqrt %59 : vector<8x1xf32>
    %61 = vector.broadcast %60 : vector<8x1xf32> to vector<8x128xf32>
    %62 = arith.mulf %52, %61 : vector<8x128xf32>
    %c0_28 = arith.constant 0 : index
    %c0_29 = arith.constant 0 : index
    %63 = vector.load %arg8[%c0_28, %c0_29] : memref<1x128xf32, #tpu.memory_space<vmem>>, vector<1x128xf32>
    %64 = vector.broadcast %63 : vector<1x128xf32> to vector<8x128xf32>
    %65 = arith.mulf %62, %64 : vector<8x128xf32>
    %c0_30 = arith.constant 0 : index
    %c0_31 = arith.constant 0 : index
    %66 = vector.load %arg9[%c0_30, %c0_31] : memref<1x128xf32, #tpu.memory_space<vmem>>, vector<1x128xf32>
    %67 = vector.broadcast %66 : vector<1x128xf32> to vector<8x128xf32>
    %68 = arith.addf %65, %67 : vector<8x128xf32>
    %cst_32 = arith.constant 0.000000e+00 : f32
    %69 = vector.broadcast %cst_32 : f32 to vector<8x128xf32>
    %70 = arith.maximumf %68, %69 : vector<8x128xf32>
    %71 = arith.addf %35, %70 : vector<8x128xf32>
    %c0_33 = arith.constant 0 : index
    %c0_34 = arith.constant 0 : index
    %72 = vector.load %arg10[%c0_33, %c0_34] : memref<128x128xbf16, #tpu.memory_space<vmem>>, vector<128x128xbf16>
    %73 = arith.truncf %71 : vector<8x128xf32> to vector<8x128xbf16>
    %cst_35 = arith.constant dense<0.000000e+00> : vector<8x128xf32>
    %74 = tpu.matmul %73, %72, %cst_35 {dimension_numbers = #tpu.dot_dimension_numbers<[1], [0], [0], [1], [0, 0, 1, 1], [], []>} : vector<8x128xbf16>, vector<128x128xbf16>, vector<8x128xf32> -> vector<8x128xf32>
    %c0_36 = arith.constant 0 : index
    %c0_37 = arith.constant 0 : index
    %75 = vector.load %arg11[%c0_36, %c0_37] : memref<1x128xf32, #tpu.memory_space<vmem>>, vector<1x128xf32>
    %76 = vector.broadcast %75 : vector<1x128xf32> to vector<8x128xf32>
    %77 = arith.addf %74, %76 : vector<8x128xf32>
    %cst_38 = arith.constant dense<0.000000e+00> : vector<8xf32>
    %78 = vector.multi_reduction <add>, %77, %cst_38 [1] : vector<8x128xf32> to vector<8xf32>
    %79 = vector.shape_cast %78 : vector<8xf32> to vector<8x1xf32>
    %cst_39 = arith.constant 1.562500e-02 : f32
    %80 = vector.broadcast %cst_39 : f32 to vector<8x1xf32>
    %81 = arith.mulf %79, %80 : vector<8x1xf32>
    %82 = tpu.iota {dimensions = array<i32: 1>} : vector<8x128xi32>
    %c64_i32_40 = arith.constant 64 : i32
    %83 = vector.broadcast %c64_i32_40 : i32 to vector<8x128xi32>
    %84 = arith.cmpi slt, %82, %83 : vector<8x128xi32>
    %85 = vector.broadcast %81 : vector<8x1xf32> to vector<8x128xf32>
    %86 = arith.subf %77, %85 : vector<8x128xf32>
    %cst_41 = arith.constant 0.000000e+00 : f32
    %87 = vector.broadcast %cst_41 : f32 to vector<8x128xf32>
    %88 = arith.select %84, %86, %87 : vector<8x128xi1>, vector<8x128xf32>
    %89 = arith.mulf %88, %88 : vector<8x128xf32>
    %cst_42 = arith.constant dense<0.000000e+00> : vector<8xf32>
    %90 = vector.multi_reduction <add>, %89, %cst_42 [1] : vector<8x128xf32> to vector<8xf32>
    %91 = vector.shape_cast %90 : vector<8xf32> to vector<8x1xf32>
    %cst_43 = arith.constant 1.562500e-02 : f32
    %92 = vector.broadcast %cst_43 : f32 to vector<8x1xf32>
    %93 = arith.mulf %91, %92 : vector<8x1xf32>
    %cst_44 = arith.constant 9.99999974E-6 : f32
    %94 = vector.broadcast %cst_44 : f32 to vector<8x1xf32>
    %95 = arith.addf %93, %94 : vector<8x1xf32>
    %96 = math.rsqrt %95 : vector<8x1xf32>
    %97 = vector.broadcast %96 : vector<8x1xf32> to vector<8x128xf32>
    %98 = arith.mulf %88, %97 : vector<8x128xf32>
    %c0_45 = arith.constant 0 : index
    %c0_46 = arith.constant 0 : index
    %99 = vector.load %arg12[%c0_45, %c0_46] : memref<1x128xf32, #tpu.memory_space<vmem>>, vector<1x128xf32>
    %100 = vector.broadcast %99 : vector<1x128xf32> to vector<8x128xf32>
    %101 = arith.mulf %98, %100 : vector<8x128xf32>
    %c0_47 = arith.constant 0 : index
    %c0_48 = arith.constant 0 : index
    %102 = vector.load %arg13[%c0_47, %c0_48] : memref<1x128xf32, #tpu.memory_space<vmem>>, vector<1x128xf32>
    %103 = vector.broadcast %102 : vector<1x128xf32> to vector<8x128xf32>
    %104 = arith.addf %101, %103 : vector<8x128xf32>
    %cst_49 = arith.constant 0.000000e+00 : f32
    %105 = vector.broadcast %cst_49 : f32 to vector<8x128xf32>
    %106 = arith.maximumf %104, %105 : vector<8x128xf32>
    %107 = arith.addf %71, %106 : vector<8x128xf32>
    %c0_50 = arith.constant 0 : index
    %c0_51 = arith.constant 0 : index
    %108 = vector.load %arg14[%c0_50, %c0_51] : memref<128x128xbf16, #tpu.memory_space<vmem>>, vector<128x128xbf16>
    %109 = arith.truncf %107 : vector<8x128xf32> to vector<8x128xbf16>
    %cst_52 = arith.constant dense<0.000000e+00> : vector<8x128xf32>
    %110 = tpu.matmul %109, %108, %cst_52 {dimension_numbers = #tpu.dot_dimension_numbers<[1], [0], [0], [1], [0, 0, 1, 1], [], []>} : vector<8x128xbf16>, vector<128x128xbf16>, vector<8x128xf32> -> vector<8x128xf32>
    %c0_53 = arith.constant 0 : index
    %c0_54 = arith.constant 0 : index
    %111 = vector.load %arg15[%c0_53, %c0_54] : memref<1x128xf32, #tpu.memory_space<vmem>>, vector<1x128xf32>
    %112 = vector.broadcast %111 : vector<1x128xf32> to vector<8x128xf32>
    %113 = arith.addf %110, %112 : vector<8x128xf32>
    %c0_55 = arith.constant 0 : index
    %c0_56 = arith.constant 0 : index
    %114 = vector.load %arg16[%c0_55, %c0_56] : memref<8x128xf32, #tpu.memory_space<vmem>>, vector<8x128xf32>
    tpu.vector_store %arg16[%c0_55, %c0_56], %113 {strides = array<i32>} : memref<8x128xf32, #tpu.memory_space<vmem>>, vector<8x128xf32>,
    return
  }
  func.func @transform_0(%arg0: i32) -> (i32, i32) {
    %c0_i32 = arith.constant 0 : i32
    %c0_i32_0 = arith.constant 0 : i32
    return %arg0, %c0_i32 : i32, i32
  }
  func.func @transform_1(%arg0: i32) -> (i32, i32) {
    %c0_i32 = arith.constant 0 : i32
    %c0_i32_0 = arith.constant 0 : i32
    %c0_i32_1 = arith.constant 0 : i32
    return %c0_i32, %c0_i32_0 : i32, i32
  }
  func.func @transform_2(%arg0: i32) -> (i32, i32) {
    %c0_i32 = arith.constant 0 : i32
    %c0_i32_0 = arith.constant 0 : i32
    %c0_i32_1 = arith.constant 0 : i32
    return %c0_i32, %c0_i32_0 : i32, i32
  }
  func.func @transform_3(%arg0: i32) -> (i32, i32) {
    %c0_i32 = arith.constant 0 : i32
    %c0_i32_0 = arith.constant 0 : i32
    %c0_i32_1 = arith.constant 0 : i32
    return %c0_i32, %c0_i32_0 : i32, i32
  }
  func.func @transform_4(%arg0: i32) -> (i32, i32) {
    %c0_i32 = arith.constant 0 : i32
    %c0_i32_0 = arith.constant 0 : i32
    %c0_i32_1 = arith.constant 0 : i32
    return %c0_i32, %c0_i32_0 : i32, i32
  }
  func.func @transform_5(%arg0: i32) -> (i32, i32) {
    %c0_i32 = arith.constant 0 : i32
    %c0_i32_0 = arith.constant 0 : i32
    %c0_i32_1 = arith.constant 0 : i32
    return %c0_i32, %c0_i32_0 : i32, i32
  }
  func.func @transform_6(%arg0: i32) -> (i32, i32) {
    %c0_i32 = arith.constant 0 : i32
    %c0_i32_0 = arith.constant 0 : i32
    %c0_i32_1 = arith.constant 0 : i32
    return %c0_i32, %c0_i32_0 : i32, i32
  }
  func.func @transform_7(%arg0: i32) -> (i32, i32) {
    %c0_i32 = arith.constant 0 : i32
    %c0_i32_0 = arith.constant 0 : i32
    %c0_i32_1 = arith.constant 0 : i32
    return %c0_i32, %c0_i32_0 : i32, i32
  }
  func.func @transform_8(%arg0: i32) -> (i32, i32) {
    %c0_i32 = arith.constant 0 : i32
    %c0_i32_0 = arith.constant 0 : i32
    %c0_i32_1 = arith.constant 0 : i32
    return %c0_i32, %c0_i32_0 : i32, i32
  }
  func.func @transform_9(%arg0: i32) -> (i32, i32) {
    %c0_i32 = arith.constant 0 : i32
    %c0_i32_0 = arith.constant 0 : i32
    %c0_i32_1 = arith.constant 0 : i32
    return %c0_i32, %c0_i32_0 : i32, i32
  }
  func.func @transform_10(%arg0: i32) -> (i32, i32) {
    %c0_i32 = arith.constant 0 : i32
    %c0_i32_0 = arith.constant 0 : i32
    %c0_i32_1 = arith.constant 0 : i32
    return %c0_i32, %c0_i32_0 : i32, i32
  }
  func.func @transform_11(%arg0: i32) -> (i32, i32) {
    %c0_i32 = arith.constant 0 : i32
    %c0_i32_0 = arith.constant 0 : i32
    %c0_i32_1 = arith.constant 0 : i32
    return %c0_i32, %c0_i32_0 : i32, i32
  }
  func.func @transform_12(%arg0: i32) -> (i32, i32) {
    %c0_i32 = arith.constant 0 : i32
    %c0_i32_0 = arith.constant 0 : i32
    %c0_i32_1 = arith.constant 0 : i32
    return %c0_i32, %c0_i32_0 : i32, i32
  }
  func.func @transform_13(%arg0: i32) -> (i32, i32) {
    %c0_i32 = arith.constant 0 : i32
    %c0_i32_0 = arith.constant 0 : i32
    %c0_i32_1 = arith.constant 0 : i32
    return %c0_i32, %c0_i32_0 : i32, i32
  }
  func.func @transform_14(%arg0: i32) -> (i32, i32) {
    %c0_i32 = arith.constant 0 : i32
    %c0_i32_0 = arith.constant 0 : i32
    %c0_i32_1 = arith.constant 0 : i32
    return %c0_i32, %c0_i32_0 : i32, i32
  }
  func.func @transform_15(%arg0: i32) -> (i32, i32) {
    %c0_i32 = arith.constant 0 : i32
    %c0_i32_0 = arith.constant 0 : i32
    return %arg0, %c0_i32 : i32, i32
  }
}

module attributes {stable_mosaic.version = 11 : i64} {
  func.func @_residual_mlp_kernel(%arg0: i32, %arg1: memref<8x128xf32, #tpu.memory_space<vmem>>, %arg2: memref<128x128xbf16, #tpu.memory_space<vmem>>, %arg3: memref<1x128xf32, #tpu.memory_space<vmem>>, %arg4: memref<1x128xf32, #tpu.memory_space<vmem>>, %arg5: memref<1x128xf32, #tpu.memory_space<vmem>>, %arg6: memref<128x128xbf16, #tpu.memory_space<vmem>>, %arg7: memref<1x128xf32, #tpu.memory_space<vmem>>, %arg8: memref<1x128xf32, #tpu.memory_space<vmem>>, %arg9: memref<1x128xf32, #tpu.memory_space<vmem>>, %arg10: memref<128x128xbf16, #tpu.memory_space<vmem>>, %arg11: memref<1x128xf32, #tpu.memory_space<vmem>>, %arg12: memref<1x128xf32, #tpu.memory_space<vmem>>, %arg13: memref<1x128xf32, #tpu.memory_space<vmem>>, %arg14: memref<128x128xbf16, #tpu.memory_space<vmem>>, %arg15: memref<1x128xf32, #tpu.memory_space<vmem>>, %arg16: memref<8x128xf32, #tpu.memory_space<vmem>>) attributes {dimension_semantics = [#tpu.dimension_semantics<parallel>], iteration_bounds = array<i64: 1>, scalar_prefetch = 0 : i64, scratch_operands = 0 : i64, tpu.core_type = #tpu.core_type<tc>, window_params = [{transform_indices = @transform_0, window_bounds = array<i64: 8, 128>}, {pipeline_mode = #tpu.pipeline_mode<synchronous>, transform_indices = @transform_1, window_bounds = array<i64: 128, 128>}, {pipeline_mode = #tpu.pipeline_mode<synchronous>, transform_indices = @transform_2, window_bounds = array<i64: 1, 128>}, {pipeline_mode = #tpu.pipeline_mode<synchronous>, transform_indices = @transform_3, window_bounds = array<i64: 1, 128>}, {pipeline_mode = #tpu.pipeline_mode<synchronous>, transform_indices = @transform_4, window_bounds = array<i64: 1, 128>}, {pipeline_mode = #tpu.pipeline_mode<synchronous>, transform_indices = @transform_5, window_bounds = array<i64: 128, 128>}, {pipeline_mode = #tpu.pipeline_mode<synchronous>, transform_indices = @transform_6, window_bounds = array<i64: 1, 128>}, {pipeline_mode = #tpu.pipeline_mode<synchronous>, transform_indices = @transform_7, window_bounds = array<i64: 1, 128>}, {pipeline_mode = #tpu.pipeline_mode<synchronous>, transform_indices = @transform_8, window_bounds = array<i64: 1, 128>}, {pipeline_mode = #tpu.pipeline_mode<synchronous>, transform_indices = @transform_9, window_bounds = array<i64: 128, 128>}, {pipeline_mode = #tpu.pipeline_mode<synchronous>, transform_indices = @transform_10, window_bounds = array<i64: 1, 128>}, {pipeline_mode = #tpu.pipeline_mode<synchronous>, transform_indices = @transform_11, window_bounds = array<i64: 1, 128>}, {pipeline_mode = #tpu.pipeline_mode<synchronous>, transform_indices = @transform_12, window_bounds = array<i64: 1, 128>}, {pipeline_mode = #tpu.pipeline_mode<synchronous>, transform_indices = @transform_13, window_bounds = array<i64: 128, 128>}, {pipeline_mode = #tpu.pipeline_mode<synchronous>, transform_indices = @transform_14, window_bounds = array<i64: 1, 128>}, {transform_indices = @transform_15, window_bounds = array<i64: 8, 128>}]} {
    %c0 = arith.constant 0 : index
    %c0_0 = arith.constant 0 : index
    %0 = vector.load %arg1[%c0, %c0_0] : memref<8x128xf32, #tpu.memory_space<vmem>>, vector<8x128xf32>
    %c0_1 = arith.constant 0 : index
    %c0_2 = arith.constant 0 : index
    %1 = vector.load %arg2[%c0_1, %c0_2] : memref<128x128xbf16, #tpu.memory_space<vmem>>, vector<128x128xbf16>
    %2 = arith.truncf %0 : vector<8x128xf32> to vector<8x128xbf16>
    %cst = arith.constant dense<0.000000e+00> : vector<8x128xf32>
    %3 = tpu.matmul %2, %1, %cst {dimension_numbers = #tpu.dot_dimension_numbers<[1], [0], [0], [1], [0, 0, 1, 1], [], []>} : vector<8x128xbf16>, vector<128x128xbf16>, vector<8x128xf32> -> vector<8x128xf32>
    %c0_3 = arith.constant 0 : index
    %c0_4 = arith.constant 0 : index
    %4 = vector.load %arg3[%c0_3, %c0_4] : memref<1x128xf32, #tpu.memory_space<vmem>>, vector<1x128xf32>
    %5 = vector.broadcast %4 : vector<1x128xf32> to vector<8x128xf32>
    %6 = arith.addf %3, %5 : vector<8x128xf32>
    %cst_5 = arith.constant dense<0.000000e+00> : vector<8xf32>
    %7 = vector.multi_reduction <add>, %6, %cst_5 [1] : vector<8x128xf32> to vector<8xf32>
    %8 = vector.shape_cast %7 : vector<8xf32> to vector<8x1xf32>
    %cst_6 = arith.constant 1.562500e-02 : f32
    %9 = vector.broadcast %cst_6 : f32 to vector<8x1xf32>
    %10 = arith.mulf %8, %9 : vector<8x1xf32>
    %11 = tpu.iota {dimensions = array<i32: 1>} : vector<8x128xi32>
    %c64_i32 = arith.constant 64 : i32
    %12 = vector.broadcast %c64_i32 : i32 to vector<8x128xi32>
    %13 = arith.cmpi slt, %11, %12 : vector<8x128xi32>
    %14 = vector.broadcast %10 : vector<8x1xf32> to vector<8x128xf32>
    %15 = arith.subf %6, %14 : vector<8x128xf32>
    %cst_7 = arith.constant 0.000000e+00 : f32
    %16 = vector.broadcast %cst_7 : f32 to vector<8x128xf32>
    %17 = arith.select %13, %15, %16 : vector<8x128xi1>, vector<8x128xf32>
    %18 = arith.mulf %17, %17 : vector<8x128xf32>
    %cst_8 = arith.constant dense<0.000000e+00> : vector<8xf32>
    %19 = vector.multi_reduction <add>, %18, %cst_8 [1] : vector<8x128xf32> to vector<8xf32>
    %20 = vector.shape_cast %19 : vector<8xf32> to vector<8x1xf32>
    %cst_9 = arith.constant 1.562500e-02 : f32
    %21 = vector.broadcast %cst_9 : f32 to vector<8x1xf32>
    %22 = arith.mulf %20, %21 : vector<8x1xf32>
    %cst_10 = arith.constant 9.99999974E-6 : f32
    %23 = vector.broadcast %cst_10 : f32 to vector<8x1xf32>
    %24 = arith.addf %22, %23 : vector<8x1xf32>
    %25 = math.rsqrt %24 : vector<8x1xf32>
    %26 = vector.broadcast %25 : vector<8x1xf32> to vector<8x128xf32>
    %27 = arith.mulf %17, %26 : vector<8x128xf32>
    %c0_11 = arith.constant 0 : index
    %c0_12 = arith.constant 0 : index
    %28 = vector.load %arg4[%c0_11, %c0_12] : memref<1x128xf32, #tpu.memory_space<vmem>>, vector<1x128xf32>
    %29 = vector.broadcast %28 : vector<1x128xf32> to vector<8x128xf32>
    %30 = arith.mulf %27, %29 : vector<8x128xf32>
    %c0_13 = arith.constant 0 : index
    %c0_14 = arith.constant 0 : index
    %31 = vector.load %arg5[%c0_13, %c0_14] : memref<1x128xf32, #tpu.memory_space<vmem>>, vector<1x128xf32>
    %32 = vector.broadcast %31 : vector<1x128xf32> to vector<8x128xf32>
    %33 = arith.addf %30, %32 : vector<8x128xf32>
    %cst_15 = arith.constant 0.000000e+00 : f32
    %34 = vector.broadcast %cst_15 : f32 to vector<8x128xf32>
    %35 = arith.maximumf %33, %34 : vector<8x128xf32>
    %c0_16 = arith.constant 0 : index
    %c0_17 = arith.constant 0 : index
    %36 = vector.load %arg6[%c0_16, %c0_17] : memref<128x128xbf16, #tpu.memory_space<vmem>>, vector<128x128xbf16>
    %37 = arith.truncf %35 : vector<8x128xf32> to vector<8x128xbf16>
    %cst_18 = arith.constant dense<0.000000e+00> : vector<8x128xf32>
    %38 = tpu.matmul %37, %36, %cst_18 {dimension_numbers = #tpu.dot_dimension_numbers<[1], [0], [0], [1], [0, 0, 1, 1], [], []>} : vector<8x128xbf16>, vector<128x128xbf16>, vector<8x128xf32> -> vector<8x128xf32>
    %c0_19 = arith.constant 0 : index
    %c0_20 = arith.constant 0 : index
    %39 = vector.load %arg7[%c0_19, %c0_20] : memref<1x128xf32, #tpu.memory_space<vmem>>, vector<1x128xf32>
    %40 = vector.broadcast %39 : vector<1x128xf32> to vector<8x128xf32>
    %41 = arith.addf %38, %40 : vector<8x128xf32>
    %cst_21 = arith.constant dense<0.000000e+00> : vector<8xf32>
    %42 = vector.multi_reduction <add>, %41, %cst_21 [1] : vector<8x128xf32> to vector<8xf32>
    %43 = vector.shape_cast %42 : vector<8xf32> to vector<8x1xf32>
    %cst_22 = arith.constant 1.562500e-02 : f32
    %44 = vector.broadcast %cst_22 : f32 to vector<8x1xf32>
    %45 = arith.mulf %43, %44 : vector<8x1xf32>
    %46 = tpu.iota {dimensions = array<i32: 1>} : vector<8x128xi32>
    %c64_i32_23 = arith.constant 64 : i32
    %47 = vector.broadcast %c64_i32_23 : i32 to vector<8x128xi32>
    %48 = arith.cmpi slt, %46, %47 : vector<8x128xi32>
    %49 = vector.broadcast %45 : vector<8x1xf32> to vector<8x128xf32>
    %50 = arith.subf %41, %49 : vector<8x128xf32>
    %cst_24 = arith.constant 0.000000e+00 : f32
    %51 = vector.broadcast %cst_24 : f32 to vector<8x128xf32>
    %52 = arith.select %48, %50, %51 : vector<8x128xi1>, vector<8x128xf32>
    %53 = arith.mulf %52, %52 : vector<8x128xf32>
    %cst_25 = arith.constant dense<0.000000e+00> : vector<8xf32>
    %54 = vector.multi_reduction <add>, %53, %cst_25 [1] : vector<8x128xf32> to vector<8xf32>
    %55 = vector.shape_cast %54 : vector<8xf32> to vector<8x1xf32>
    %cst_26 = arith.constant 1.562500e-02 : f32
    %56 = vector.broadcast %cst_26 : f32 to vector<8x1xf32>
    %57 = arith.mulf %55, %56 : vector<8x1xf32>
    %cst_27 = arith.constant 9.99999974E-6 : f32
    %58 = vector.broadcast %cst_27 : f32 to vector<8x1xf32>
    %59 = arith.addf %57, %58 : vector<8x1xf32>
    %60 = math.rsqrt %59 : vector<8x1xf32>
    %61 = vector.broadcast %60 : vector<8x1xf32> to vector<8x128xf32>
    %62 = arith.mulf %52, %61 : vector<8x128xf32>
    %c0_28 = arith.constant 0 : index
    %c0_29 = arith.constant 0 : index
    %63 = vector.load %arg8[%c0_28, %c0_29] : memref<1x128xf32, #tpu.memory_space<vmem>>, vector<1x128xf32>
    %64 = vector.broadcast %63 : vector<1x128xf32> to vector<8x128xf32>
    %65 = arith.mulf %62, %64 : vector<8x128xf32>
    %c0_30 = arith.constant 0 : index
    %c0_31 = arith.constant 0 : index
    %66 = vector.load %arg9[%c0_30, %c0_31] : memref<1x128xf32, #tpu.memory_space<vmem>>, vector<1x128xf32>
    %67 = vector.broadcast %66 : vector<1x128xf32> to vector<8x128xf32>
    %68 = arith.addf %65, %67 : vector<8x128xf32>
    %cst_32 = arith.constant 0.000000e+00 : f32
    %69 = vector.broadcast %cst_32 : f32 to vector<8x128xf32>
    %70 = arith.maximumf %68, %69 : vector<8x128xf32>
    %71 = arith.addf %35, %70 : vector<8x128xf32>
    %c0_33 = arith.constant 0 : index
    %c0_34 = arith.constant 0 : index
    %72 = vector.load %arg10[%c0_33, %c0_34] : memref<128x128xbf16, #tpu.memory_space<vmem>>, vector<128x128xbf16>
    %73 = arith.truncf %71 : vector<8x128xf32> to vector<8x128xbf16>
    %cst_35 = arith.constant dense<0.000000e+00> : vector<8x128xf32>
    %74 = tpu.matmul %73, %72, %cst_35 {dimension_numbers = #tpu.dot_dimension_numbers<[1], [0], [0], [1], [0, 0, 1, 1], [], []>} : vector<8x128xbf16>, vector<128x128xbf16>, vector<8x128xf32> -> vector<8x128xf32>
    %c0_36 = arith.constant 0 : index
    %c0_37 = arith.constant 0 : index
    %75 = vector.load %arg11[%c0_36, %c0_37] : memref<1x128xf32, #tpu.memory_space<vmem>>, vector<1x128xf32>
    %76 = vector.broadcast %75 : vector<1x128xf32> to vector<8x128xf32>
    %77 = arith.addf %74, %76 : vector<8x128xf32>
    %cst_38 = arith.constant dense<0.000000e+00> : vector<8xf32>
    %78 = vector.multi_reduction <add>, %77, %cst_38 [1] : vector<8x128xf32> to vector<8xf32>
    %79 = vector.shape_cast %78 : vector<8xf32> to vector<8x1xf32>
    %cst_39 = arith.constant 1.562500e-02 : f32
    %80 = vector.broadcast %cst_39 : f32 to vector<8x1xf32>
    %81 = arith.mulf %79, %80 : vector<8x1xf32>
    %82 = tpu.iota {dimensions = array<i32: 1>} : vector<8x128xi32>
    %c64_i32_40 = arith.constant 64 : i32
    %83 = vector.broadcast %c64_i32_40 : i32 to vector<8x128xi32>
    %84 = arith.cmpi slt, %82, %83 : vector<8x128xi32>
    %85 = vector.broadcast %81 : vector<8x1xf32> to vector<8x128xf32>
    %86 = arith.subf %77, %85 : vector<8x128xf32>
    %cst_41 = arith.constant 0.000000e+00 : f32
    %87 = vector.broadcast %cst_41 : f32 to vector<8x128xf32>
    %88 = arith.select %84, %86, %87 : vector<8x128xi1>, vector<8x128xf32>
    %89 = arith.mulf %88, %88 : vector<8x128xf32>
    %cst_42 = arith.constant dense<0.000000e+00> : vector<8xf32>
    %90 = vector.multi_reduction <add>, %89, %cst_42 [1] : vector<8x128xf32> to vector<8xf32>
    %91 = vector.shape_cast %90 : vector<8xf32> to vector<8x1xf32>
    %cst_43 = arith.constant 1.562500e-02 : f32
    %92 = vector.broadcast %cst_43 : f32 to vector<8x1xf32>
    %93 = arith.mulf %91, %92 : vector<8x1xf32>
    %cst_44 = arith.constant 9.99999974E-6 : f32
    %94 = vector.broadcast %cst_44 : f32 to vector<8x1xf32>
    %95 = arith.addf %93, %94 : vector<8x1xf32>
    %96 = math.rsqrt %95 : vector<8x1xf32>
    %97 = vector.broadcast %96 : vector<8x1xf32> to vector<8x128xf32>
    %98 = arith.mulf %88, %97 : vector<8x128xf32>
    %c0_45 = arith.constant 0 : index
    %c0_46 = arith.constant 0 : index
    %99 = vector.load %arg12[%c0_45, %c0_46] : memref<1x128xf32, #tpu.memory_space<vmem>>, vector<1x128xf32>
    %100 = vector.broadcast %99 : vector<1x128xf32> to vector<8x128xf32>
    %101 = arith.mulf %98, %100 : vector<8x128xf32>
    %c0_47 = arith.constant 0 : index
    %c0_48 = arith.constant 0 : index
    %102 = vector.load %arg13[%c0_47, %c0_48] : memref<1x128xf32, #tpu.memory_space<vmem>>, vector<1x128xf32>
    %103 = vector.broadcast %102 : vector<1x128xf32> to vector<8x128xf32>
    %104 = arith.addf %101, %103 : vector<8x128xf32>
    %cst_49 = arith.constant 0.000000e+00 : f32
    %105 = vector.broadcast %cst_49 : f32 to vector<8x128xf32>
    %106 = arith.maximumf %104, %105 : vector<8x128xf32>
    %107 = arith.addf %71, %106 : vector<8x128xf32>
    %c0_50 = arith.constant 0 : index
    %c0_51 = arith.constant 0 : index
    %108 = vector.load %arg14[%c0_50, %c0_51] : memref<128x128xbf16, #tpu.memory_space<vmem>>, vector<128x128xbf16>
    %109 = arith.truncf %107 : vector<8x128xf32> to vector<8x128xbf16>
    %cst_52 = arith.constant dense<0.000000e+00> : vector<8x128xf32>
    %110 = tpu.matmul %109, %108, %cst_52 {dimension_numbers = #tpu.dot_dimension_numbers<[1], [0], [0], [1], [0, 0, 1, 1], [], []>} : vector<8x128xbf16>, vector<128x128xbf16>, vector<8x128xf32> -> vector<8x128xf32>
    %c0_53 = arith.constant 0 : index
    %c0_54 = arith.constant 0 : index
    %111 = vector.load %arg15[%c0_53, %c0_54] : memref<1x128xf32, #tpu.memory_space<vmem>>, vector<1x128xf32>
    %112 = vector.broadcast %111 : vector<1x128xf32> to vector<8x128xf32>
    %113 = arith.addf %110, %112 : vector<8x128xf32>
    %c0_55 = arith.constant 0 : index
    %c0_56 = arith.constant 0 : index
    %114 = vector.load %arg16[%c0_55, %c0_56] : memref<8x128xf32, #tpu.memory_space<vmem>>, vector<8x128xf32>
    tpu.vector_store %arg16[%c0_55, %c0_56], %113 {strides = array<i32>} : memref<8x128xf32, #tpu.memory_space<vmem>>, vector<8x128xf32>,
    return
  }
  func.func @transform_0(%arg0: i32) -> (i32, i32) {
    %c0_i32 = arith.constant 0 : i32
    %c0_i32_0 = arith.constant 0 : i32
    return %arg0, %c0_i32 : i32, i32
  }
  func.func @transform_1(%arg0: i32) -> (i32, i32) {
    %c0_i32 = arith.constant 0 : i32
    %c0_i32_0 = arith.constant 0 : i32
    %c0_i32_1 = arith.constant 0 : i32
    return %c0_i32, %c0_i32_0 : i32, i32
  }
  func.func @transform_2(%arg0: i32) -> (i32, i32) {
    %c0_i32 = arith.constant 0 : i32
    %c0_i32_0 = arith.constant 0 : i32
    %c0_i32_1 = arith.constant 0 : i32
    return %c0_i32, %c0_i32_0 : i32, i32
  }
  func.func @transform_3(%arg0: i32) -> (i32, i32) {
    %c0_i32 = arith.constant 0 : i32
    %c0_i32_0 = arith.constant 0 : i32
    %c0_i32_1 = arith.constant 0 : i32
    return %c0_i32, %c0_i32_0 : i32, i32
  }
  func.func @transform_4(%arg0: i32) -> (i32, i32) {
    %c0_i32 = arith.constant 0 : i32
    %c0_i32_0 = arith.constant 0 : i32
    %c0_i32_1 = arith.constant 0 : i32
    return %c0_i32, %c0_i32_0 : i32, i32
  }
  func.func @transform_5(%arg0: i32) -> (i32, i32) {
    %c0_i32 = arith.constant 0 : i32
    %c0_i32_0 = arith.constant 0 : i32
    %c0_i32_1 = arith.constant 0 : i32
    return %c0_i32, %c0_i32_0 : i32, i32
  }
  func.func @transform_6(%arg0: i32) -> (i32, i32) {
    %c0_i32 = arith.constant 0 : i32
    %c0_i32_0 = arith.constant 0 : i32
    %c0_i32_1 = arith.constant 0 : i32
    return %c0_i32, %c0_i32_0 : i32, i32
  }
  func.func @transform_7(%arg0: i32) -> (i32, i32) {
    %c0_i32 = arith.constant 0 : i32
    %c0_i32_0 = arith.constant 0 : i32
    %c0_i32_1 = arith.constant 0 : i32
    return %c0_i32, %c0_i32_0 : i32, i32
  }
  func.func @transform_8(%arg0: i32) -> (i32, i32) {
    %c0_i32 = arith.constant 0 : i32
    %c0_i32_0 = arith.constant 0 : i32
    %c0_i32_1 = arith.constant 0 : i32
    return %c0_i32, %c0_i32_0 : i32, i32
  }
  func.func @transform_9(%arg0: i32) -> (i32, i32) {
    %c0_i32 = arith.constant 0 : i32
    %c0_i32_0 = arith.constant 0 : i32
    %c0_i32_1 = arith.constant 0 : i32
    return %c0_i32, %c0_i32_0 : i32, i32
  }
  func.func @transform_10(%arg0: i32) -> (i32, i32) {
    %c0_i32 = arith.constant 0 : i32
    %c0_i32_0 = arith.constant 0 : i32
    %c0_i32_1 = arith.constant 0 : i32
    return %c0_i32, %c0_i32_0 : i32, i32
  }
  func.func @transform_11(%arg0: i32) -> (i32, i32) {
    %c0_i32 = arith.constant 0 : i32
    %c0_i32_0 = arith.constant 0 : i32
    %c0_i32_1 = arith.constant 0 : i32
    return %c0_i32, %c0_i32_0 : i32, i32
  }
  func.func @transform_12(%arg0: i32) -> (i32, i32) {
    %c0_i32 = arith.constant 0 : i32
    %c0_i32_0 = arith.constant 0 : i32
    %c0_i32_1 = arith.constant 0 : i32
    return %c0_i32, %c0_i32_0 : i32, i32
  }
  func.func @transform_13(%arg0: i32) -> (i32, i32) {
    %c0_i32 = arith.constant 0 : i32
    %c0_i32_0 = arith.constant 0 : i32
    %c0_i32_1 = arith.constant 0 : i32
    return %c0_i32, %c0_i32_0 : i32, i32
  }
  func.func @transform_14(%arg0: i32) -> (i32, i32) {
    %c0_i32 = arith.constant 0 : i32
    %c0_i32_0 = arith.constant 0 : i32
    %c0_i32_1 = arith.constant 0 : i32
    return %c0_i32, %c0_i32_0 : i32, i32
  }
  func.func @transform_15(%arg0: i32) -> (i32, i32) {
    %c0_i32 = arith.constant 0 : i32
    %c0_i32_0 = arith.constant 0 : i32
    return %arg0, %c0_i32 : i32, i32
  }
}

</mosaic_0001>

<llo_original>
// kernel: tpu_custom_call.1
$region0: #{tpu_custom_call.1}
  #allocation0 [shape = 'u32[]', space=smem, size = 0x4, offset = 0x4, fixed_abs, tag = 'smem constant byte address 0x4 - core index']
  #allocation1 [shape = 'u32[144,128]{1,0:T(1,128)}', space=vmem, size = 0x12000, scoped, tag = 'internal scratch']
  %s0 = inlined_call_operand.hbm [shape: f32[8,128], index: 0, kind: input, shape index: {}]
  %s1 = inlined_call_operand.hbm [shape: bf16[128,128], index: 1, kind: input, shape index: {}]
  %s2 = inlined_call_operand.vmem [shape: f32[1,128], index: 2, kind: input, shape index: {}]
  %s3 = inlined_call_operand.vmem [shape: f32[1,128], index: 3, kind: input, shape index: {}]
  %s4 = inlined_call_operand.vmem [shape: f32[1,128], index: 4, kind: input, shape index: {}]
  %s5 = inlined_call_operand.hbm [shape: bf16[128,128], index: 5, kind: input, shape index: {}]
  %s6 = inlined_call_operand.vmem [shape: f32[1,128], index: 6, kind: input, shape index: {}]
  %s7 = inlined_call_operand.vmem [shape: f32[1,128], index: 7, kind: input, shape index: {}]
  %s8 = inlined_call_operand.vmem [shape: f32[1,128], index: 8, kind: input, shape index: {}]
  %s9 = inlined_call_operand.hbm [shape: bf16[128,128], index: 9, kind: input, shape index: {}]
  %s10 = inlined_call_operand.vmem [shape: f32[1,128], index: 10, kind: input, shape index: {}]
  %s11 = inlined_call_operand.vmem [shape: f32[1,128], index: 11, kind: input, shape index: {}]
  %s12 = inlined_call_operand.vmem [shape: f32[1,128], index: 12, kind: input, shape index: {}]
  %s13 = inlined_call_operand.hbm [shape: bf16[128,128], index: 13, kind: input, shape index: {}]
  %s14 = inlined_call_operand.vmem [shape: f32[1,128], index: 14, kind: input, shape index: {}]
  %s15 = inlined_call_operand.hbm [shape: f32[8,128], index: 15, kind: output, shape index: {}]
  %s16 = sld [smem:[#allocation0]]
  $region90: #{tpu_custom_call.1} parent=0
    _
  %s18 = ssub.s32 1, %s16
  %s19 = scalar_select 0, %s18, %s16
  $region1: #{tpu_custom_call.1} parent=0
    #allocation2 [shape = 'u8[4096]{0}', space=vmem, size = 0x1000, scoped, tag = 'input window, operand 0, single buffered']
    #allocation3 [shape = 's32[1]{0}', space=sflag, size = 0x4, scoped, tag = 'scoped memory for tpu_custom_call.1']
    #allocation4 [shape = 's32[1]{0}', space=sflag, size = 0x4, scoped, tag = 'scoped memory for tpu_custom_call.1']
    #allocation5 [shape = 'u8[32768]{0}', space=vmem, size = 0x8000, scoped, tag = 'input window, operand 1, single buffered']
    #allocation6 [shape = 's32[1]{0}', space=sflag, size = 0x4, scoped, tag = 'scoped memory for tpu_custom_call.1']
    #allocation7 [shape = 'u8[32768]{0}', space=vmem, size = 0x8000, scoped, tag = 'input window, operand 5, single buffered']
    #allocation8 [shape = 'u8[32768]{0}', space=vmem, size = 0x8000, scoped, tag = 'input window, operand 9, single buffered']
    #allocation9 [shape = 's32[1]{0}', space=sflag, size = 0x4, scoped, tag = 'scoped memory for tpu_custom_call.1']
    #allocation10 [shape = 'u8[32768]{0}', space=vmem, size = 0x8000, scoped, tag = 'input window, operand 13, single buffered']
    #allocation11 [shape = 'u8[4096]{0}', space=vmem, size = 0x1000, scoped, tag = 'output window, operand 0, single buffered']
    %20 = vsyncpa [#allocation3], 0
    %21 = vsyncpa [#allocation6], 0
    %22 = vsyncpa [#allocation9], 0
    %23 = vsyncpa [#allocation4], 0
    // Predicated region
    $region2: #{tpu_custom_call.1} parent=1 // pred_check
      _
    $region3: #{tpu_custom_call.1} parent=1 // pred_check_branch
      %25 = sbr.rel (0) target = $region5
    $region4: #{tpu_custom_call.1} parent=1 // pred_region
      %s27 = ssub.s32 128, 128
      %28 = vsyncadd [#allocation3], %s27
      %s30 = sshll.u32 [#allocation2], 4
      %s31 = int_to_ptr.vmem [resolvable:$true] %s30
      %33 = dma.hbm_to_vmem [thread:$0]  %s0, 128, %s31, [#allocation3]
    $region5: #{tpu_custom_call.1} parent=1 // pred_fallthru
      _
    // Predicated region
    $region6: #{tpu_custom_call.1} parent=1 // pred_check
      _
    $region7: #{tpu_custom_call.1} parent=1 // pred_check_branch
      %35 = sbr.rel (0) target = $region9
    $region8: #{tpu_custom_call.1} parent=1 // pred_region
      %s37 = ssub.s32 1024, 1024
      %38 = vsyncadd [#allocation6], %s37
      %s39 = sshll.u32 [#allocation5], 4
      %s40 = int_to_ptr.vmem [resolvable:$true] %s39
      %45 = dma.hbm_to_vmem [thread:$0]  %s1, 1024, %s40, [#allocation6], 64, 64, 4
    $region9: #{tpu_custom_call.1} parent=1 // pred_fallthru
      _
    // Predicated region
    $region10: #{tpu_custom_call.1} parent=1 // pred_check
      _
    $region11: #{tpu_custom_call.1} parent=1 // pred_check_branch
      %47 = sbr.rel (0) target = $region13
    $region12: #{tpu_custom_call.1} parent=1 // pred_region
      _
    $region13: #{tpu_custom_call.1} parent=1 // pred_fallthru
      _
    // Predicated region
    $region14: #{tpu_custom_call.1} parent=1 // pred_check
      _
    $region15: #{tpu_custom_call.1} parent=1 // pred_check_branch
      %49 = sbr.rel (0) target = $region17
    $region16: #{tpu_custom_call.1} parent=1 // pred_region
      _
    $region17: #{tpu_custom_call.1} parent=1 // pred_fallthru
      _
    // Predicated region
    $region18: #{tpu_custom_call.1} parent=1 // pred_check
      _
    $region19: #{tpu_custom_call.1} parent=1 // pred_check_branch
      %51 = sbr.rel (0) target = $region21
    $region20: #{tpu_custom_call.1} parent=1 // pred_region
      _
    $region21: #{tpu_custom_call.1} parent=1 // pred_fallthru
      _
    // Predicated region
    $region22: #{tpu_custom_call.1} parent=1 // pred_check
      _
    $region23: #{tpu_custom_call.1} parent=1 // pred_check_branch
      %53 = sbr.rel (0) target = $region25
    $region24: #{tpu_custom_call.1} parent=1 // pred_region
      %s55 = ssub.s32 1024, 1024
      %56 = vsyncadd [#allocation6], %s55
      %s57 = sshll.u32 [#allocation7], 4
      %s58 = int_to_ptr.vmem [resolvable:$true] %s57
      %63 = dma.hbm_to_vmem [thread:$0]  %s5, 1024, %s58, [#allocation6], 64, 64, 4
    $region25: #{tpu_custom_call.1} parent=1 // pred_fallthru
      _
    // Predicated region
    $region26: #{tpu_custom_call.1} parent=1 // pred_check
      _
    $region27: #{tpu_custom_call.1} parent=1 // pred_check_branch
      %65 = sbr.rel (0) target = $region29
    $region28: #{tpu_custom_call.1} parent=1 // pred_region
      _
    $region29: #{tpu_custom_call.1} parent=1 // pred_fallthru
      _
    // Predicated region
    $region30: #{tpu_custom_call.1} parent=1 // pred_check
      _
    $region31: #{tpu_custom_call.1} parent=1 // pred_check_branch
      %67 = sbr.rel (0) target = $region33
    $region32: #{tpu_custom_call.1} parent=1 // pred_region
      _
    $region33: #{tpu_custom_call.1} parent=1 // pred_fallthru
      _
    // Predicated region
    $region34: #{tpu_custom_call.1} parent=1 // pred_check
      _
    $region35: #{tpu_custom_call.1} parent=1 // pred_check_branch
      %69 = sbr.rel (0) target = $region37
    $region36: #{tpu_custom_call.1} parent=1 // pred_region
      _
    $region37: #{tpu_custom_call.1} parent=1 // pred_fallthru
      _
    // Predicated region
    $region38: #{tpu_custom_call.1} parent=1 // pred_check
      _
    $region39: #{tpu_custom_call.1} parent=1 // pred_check_branch
      %71 = sbr.rel (0) target = $region41
    $region40: #{tpu_custom_call.1} parent=1 // pred_region
      %s73 = ssub.s32 1024, 1024
      %74 = vsyncadd [#allocation9], %s73
      %s75 = sshll.u32 [#allocation8], 4
      %s76 = int_to_ptr.vmem [resolvable:$true] %s75
      %81 = dma.hbm_to_vmem [thread:$0]  %s9, 1024, %s76, [#allocation9], 64, 64, 4
    $region41: #{tpu_custom_call.1} parent=1 // pred_fallthru
      _
    // Predicated region
    $region42: #{tpu_custom_call.1} parent=1 // pred_check
      _
    $region43: #{tpu_custom_call.1} parent=1 // pred_check_branch
      %83 = sbr.rel (0) target = $region45
    $region44: #{tpu_custom_call.1} parent=1 // pred_region
      _
    $region45: #{tpu_custom_call.1} parent=1 // pred_fallthru
      _
    // Predicated region
    $region46: #{tpu_custom_call.1} parent=1 // pred_check
      _
    $region47: #{tpu_custom_call.1} parent=1 // pred_check_branch
      %85 = sbr.rel (0) target = $region49
    $region48: #{tpu_custom_call.1} parent=1 // pred_region
      _
    $region49: #{tpu_custom_call.1} parent=1 // pred_fallthru
      _
    // Predicated region
    $region50: #{tpu_custom_call.1} parent=1 // pred_check
      _
    $region51: #{tpu_custom_call.1} parent=1 // pred_check_branch
      %87 = sbr.rel (0) target = $region53
    $region52: #{tpu_custom_call.1} parent=1 // pred_region
      _
    $region53: #{tpu_custom_call.1} parent=1 // pred_fallthru
      _
    // Predicated region
    $region54: #{tpu_custom_call.1} parent=1 // pred_check
      _
    $region55: #{tpu_custom_call.1} parent=1 // pred_check_branch
      %89 = sbr.rel (0) target = $region57
    $region56: #{tpu_custom_call.1} parent=1 // pred_region
      %s91 = ssub.s32 1024, 1024
      %92 = vsyncadd [#allocation9], %s91
      %s93 = sshll.u32 [#allocation10], 4
      %s94 = int_to_ptr.vmem [resolvable:$true] %s93
      %99 = dma.hbm_to_vmem [thread:$0]  %s13, 1024, %s94, [#allocation9], 64, 64, 4
    $region57: #{tpu_custom_call.1} parent=1 // pred_fallthru
      _
    // Predicated region
    $region58: #{tpu_custom_call.1} parent=1 // pred_check
      _
    $region59: #{tpu_custom_call.1} parent=1 // pred_check_branch
      %101 = sbr.rel (0) target = $region61
    $region60: #{tpu_custom_call.1} parent=1 // pred_region
      _
    $region61: #{tpu_custom_call.1} parent=1 // pred_fallthru
      _
    // Predicated region
    $region62: #{tpu_custom_call.1} parent=1 // pred_check
      _
    $region63: #{tpu_custom_call.1} parent=1 // pred_check_branch
      %103 = sbr.rel (0) target = $region65
    $region64: #{tpu_custom_call.1} parent=1 // pred_region
      %104 = dma.done [#allocation3], 128
    $region65: #{tpu_custom_call.1} parent=1 // pred_fallthru
      _
    // Predicated region
    $region66: #{tpu_custom_call.1} parent=1 // pred_check
      _
    $region67: #{tpu_custom_call.1} parent=1 // pred_check_branch
      %106 = sbr.rel (0) target = $region69
    $region68: #{tpu_custom_call.1} parent=1 // pred_region
      %107 = dma.done [#allocation6], 1024
    $region69: #{tpu_custom_call.1} parent=1 // pred_fallthru
      _
    // Predicated region
    $region70: #{tpu_custom_call.1} parent=1 // pred_check
      _
    $region71: #{tpu_custom_call.1} parent=1 // pred_check_branch
      %109 = sbr.rel (0) target = $region73
    $region72: #{tpu_custom_call.1} parent=1 // pred_region
      %110 = dma.done [#allocation6], 1024
    $region73: #{tpu_custom_call.1} parent=1 // pred_fallthru
      _
    // Predicated region
    $region74: #{tpu_custom_call.1} parent=1 // pred_check
      _
    $region75: #{tpu_custom_call.1} parent=1 // pred_check_branch
      %112 = sbr.rel (0) target = $region77
    $region76: #{tpu_custom_call.1} parent=1 // pred_region
      %113 = dma.done [#allocation9], 1024
    $region77: #{tpu_custom_call.1} parent=1 // pred_fallthru
      _
    // Predicated region
    $region78: #{tpu_custom_call.1} parent=1 // pred_check
      _
    $region79: #{tpu_custom_call.1} parent=1 // pred_check_branch
      %115 = sbr.rel (0) target = $region81
    $region80: #{tpu_custom_call.1} parent=1 // pred_region
      %116 = dma.done [#allocation9], 1024
    $region81: #{tpu_custom_call.1} parent=1 // pred_fallthru
      _
    %v118 = vld [vmem:[#allocation2] sm:$0xff]
    %v119 = vld [vmem:[#allocation5] sm:$0xf]
    %v120 = vld [vmem:[#allocation5 + $0x4] sm:$0xf]
    %v121 = vld [vmem:[#allocation5 + $0x8] sm:$0xf]
    %v122 = vld [vmem:[#allocation5 + $0xc] sm:$0xf]
    %v123 = vld [vmem:[#allocation5 + $0x10] sm:$0xf]
    %v124 = vld [vmem:[#allocation5 + $0x14] sm:$0xf]
    %v125 = vld [vmem:[#allocation5 + $0x18] sm:$0xf]
    %v126 = vld [vmem:[#allocation5 + $0x1c] sm:$0xf]
    %v127 = vld [vmem:[#allocation5 + $0x20] sm:$0xf]
    %v128 = vld [vmem:[#allocation5 + $0x24] sm:$0xf]
    %v129 = vld [vmem:[#allocation5 + $0x28] sm:$0xf]
    %v130 = vld [vmem:[#allocation5 + $0x2c] sm:$0xf]
    %v131 = vld [vmem:[#allocation5 + $0x30] sm:$0xf]
    %v132 = vld [vmem:[#allocation5 + $0x34] sm:$0xf]
    %v133 = vld [vmem:[#allocation5 + $0x38] sm:$0xf]
    %v134 = vld [vmem:[#allocation5 + $0x3c] sm:$0xf]
    %v135 = vpack.c.bf16 %v118, %v118
    %v136 = vld [vmem:[%s2] sm:$0x1]
    %v138 = vlaneseq
    %v139 = vshrl.u32 %v138, 7
    %v140 = vsub.s32 0, %v139
    %v141 = vrot.slane %v136, %v140
    %v159 = vunpack.c.l.b16 %v119
    %v160 = vunpack.c.l.b16 %v120
    %v161 = vunpack.c.l.b16 %v121
    %v162 = vunpack.c.l.b16 %v122
    %v163 = vunpack.c.l.b16 %v123
    %v164 = vunpack.c.l.b16 %v124
    %v165 = vunpack.c.l.b16 %v125
    %v166 = vunpack.c.l.b16 %v126
    %v167 = vunpack.c.l.b16 %v127
    %v168 = vunpack.c.l.b16 %v128
    %v169 = vunpack.c.l.b16 %v129
    %v170 = vunpack.c.l.b16 %v130
    %v171 = vunpack.c.l.b16 %v131
    %v172 = vunpack.c.l.b16 %v132
    %v173 = vunpack.c.l.b16 %v133
    %v174 = vunpack.c.l.b16 %v134
    %v175 = vpack.c.b16 %v160, %v159
    %v176 = vpack.c.b16 %v162, %v161
    %v177 = vpack.c.b16 %v164, %v163
    %v178 = vpack.c.b16 %v166, %v165
    %v179 = vpack.c.b16 %v168, %v167
    %v180 = vpack.c.b16 %v170, %v169
    %v181 = vpack.c.b16 %v172, %v171
    %v182 = vpack.c.b16 %v174, %v173
    %191 = vmatprep.subr.bf16.mxu0 0
    %192 = vmatpush1.bf16.msra.mxu0 %v175
    %193 = vmatprep.subr.bf16.mxu0 0
    %194 = vmatpush1.bf16.msra.mxu0 %v176
    %195 = vmatprep.subr.bf16.mxu0 0
    %196 = vmatpush1.bf16.msra.mxu0 %v177
    %197 = vmatprep.subr.bf16.mxu0 0
    %198 = vmatpush1.bf16.msra.mxu0 %v178
    %199 = vmatprep.subr.bf16.mxu0 0
    %200 = vmatpush1.bf16.msra.mxu0 %v179
    %201 = vmatprep.subr.bf16.mxu0 0
    %202 = vmatpush1.bf16.msra.mxu0 %v180
    %203 = vmatprep.subr.bf16.mxu0 0
    %204 = vmatpush1.bf16.msra.mxu0 %v181
    %205 = vmatprep.subr.bf16.mxu0 0
    %206 = vmatpush1.bf16.msra.mxu0 %v182
    %207 = vmatprep.subr.bf16.mxu0 0
    %208 = vmatpush1.bf16.msra.mxu0 0
    %209 = vmatprep.subr.bf16.mxu0 0
    %210 = vmatpush1.bf16.msra.mxu0 0
    %211 = vmatprep.subr.bf16.mxu0 0
    %212 = vmatpush1.bf16.msra.mxu0 0
    %213 = vmatprep.subr.bf16.mxu0 0
    %214 = vmatpush1.bf16.msra.mxu0 0
    %215 = vmatprep.subr.bf16.mxu0 0
    %216 = vmatpush1.bf16.msra.mxu0 0
    %217 = vmatprep.subr.bf16.mxu0 0
    %218 = vmatpush1.bf16.msra.mxu0 0
    %219 = vmatprep.subr.bf16.mxu0 0
    %220 = vmatpush1.bf16.msra.mxu0 0
    %221 = vmatprep.subr.bf16.mxu0 0
    %222 = vmatpush1.bf16.msra.mxu0 0
    %223 = vmatprep.mubr.bf16.mxu0 0
    %224 = vmatmul.mubr.bf16.gmra.mrb[0].mxu0 %v135
    %v225 = vpop.f32.mrb[0].mxu0
    %v226 = vadd.f32 %v141, %v225
    %v227 = vpop.f32.mrb[0].mxu0
    %v228 = vpop.f32.mrb[0].mxu0
    %v229 = vpop.f32.mrb[0].mxu0
    %230 = vdwg.mxu0
    %231 = vadd.xlane.f32.xlu0 %v226
    %v232 = vpop.xlane.xlu0 %231
    %v233 = vmul.f32 %v232, 0.015625
    %v234 = vlaneseq
    %v235 = vand.u32 %v234, 127
    %vm236 = vcmp.lt.s32.totalorder %v235, 64
    %v237 = vsub.f32 %v226, %v233
    %v238 = vsel %vm236, %v237, 0.0
    %v239 = vmul.f32 %v238, %v238
    %240 = vadd.xlane.f32.xlu0 %v239
    %v241 = vpop.xlane.xlu0 %240
    %v242 = vmul.f32 %v241, 0.015625
    %v243 = vadd.f32 %v242, 1e-05
    %v244 = vrsqrt.pop %v243
    %v245 = vmul.f32 %v238, %v244
    %v246 = vld [vmem:[%s3] sm:$0x1]
    %v248 = vlaneseq
    %v249 = vshrl.u32 %v248, 7
    %v250 = vsub.s32 0, %v249
    %v251 = vrot.slane %v246, %v250
    %v253 = vmul.f32 %v245, %v251
    %v254 = vld [vmem:[%s4] sm:$0x1]
    %v256 = vlaneseq
    %v257 = vshrl.u32 %v256, 7
    %v258 = vsub.s32 0, %v257
    %v259 = vrot.slane %v254, %v258
    %v261 = vadd.f32 %v253, %v259
    %v262 = vmax.f32 %v261, 0.0
    %v263 = vld [vmem:[#allocation7] sm:$0xf]
    %v264 = vld [vmem:[#allocation7 + $0x4] sm:$0xf]
    %v265 = vld [vmem:[#allocation7 + $0x8] sm:$0xf]
    %v266 = vld [vmem:[#allocation7 + $0xc] sm:$0xf]
    %v267 = vld [vmem:[#allocation7 + $0x10] sm:$0xf]
    %v268 = vld [vmem:[#allocation7 + $0x14] sm:$0xf]
    %v269 = vld [vmem:[#allocation7 + $0x18] sm:$0xf]
    %v270 = vld [vmem:[#allocation7 + $0x1c] sm:$0xf]
    %v271 = vld [vmem:[#allocation7 + $0x20] sm:$0xf]
    %v272 = vld [vmem:[#allocation7 + $0x24] sm:$0xf]
    %v273 = vld [vmem:[#allocation7 + $0x28] sm:$0xf]
    %v274 = vld [vmem:[#allocation7 + $0x2c] sm:$0xf]
    %v275 = vld [vmem:[#allocation7 + $0x30] sm:$0xf]
    %v276 = vld [vmem:[#allocation7 + $0x34] sm:$0xf]
    %v277 = vld [vmem:[#allocation7 + $0x38] sm:$0xf]
    %v278 = vld [vmem:[#allocation7 + $0x3c] sm:$0xf]
    %v279 = vpack.c.bf16 %v262, %v262
    %v280 = vld [vmem:[%s6] sm:$0x1]
    %v282 = vlaneseq
    %v283 = vshrl.u32 %v282, 7
    %v284 = vsub.s32 0, %v283
    %v285 = vrot.slane %v280, %v284
    %v303 = vunpack.c.l.b16 %v263
    %v304 = vunpack.c.l.b16 %v264
    %v305 = vunpack.c.l.b16 %v265
    %v306 = vunpack.c.l.b16 %v266
    %v307 = vunpack.c.l.b16 %v267
    %v308 = vunpack.c.l.b16 %v268
    %v309 = vunpack.c.l.b16 %v269
    %v310 = vunpack.c.l.b16 %v270
    %v311 = vunpack.c.l.b16 %v271
    %v312 = vunpack.c.l.b16 %v272
    %v313 = vunpack.c.l.b16 %v273
    %v314 = vunpack.c.l.b16 %v274
    %v315 = vunpack.c.l.b16 %v275
    %v316 = vunpack.c.l.b16 %v276
    %v317 = vunpack.c.l.b16 %v277
    %v318 = vunpack.c.l.b16 %v278
    %v319 = vpack.c.b16 %v304, %v303
    %v320 = vpack.c.b16 %v306, %v305
    %v321 = vpack.c.b16 %v308, %v307
    %v322 = vpack.c.b16 %v310, %v309
    %v323 = vpack.c.b16 %v312, %v311
    %v324 = vpack.c.b16 %v314, %v313
    %v325 = vpack.c.b16 %v316, %v315
    %v326 = vpack.c.b16 %v318, %v317
    %335 = vmatprep.subr.bf16.mxu0 0
    %336 = vmatpush1.bf16.msra.mxu0 %v319
    %337 = vmatprep.subr.bf16.mxu0 0
    %338 = vmatpush1.bf16.msra.mxu0 %v320
    %339 = vmatprep.subr.bf16.mxu0 0
    %340 = vmatpush1.bf16.msra.mxu0 %v321
    %341 = vmatprep.subr.bf16.mxu0 0
    %342 = vmatpush1.bf16.msra.mxu0 %v322
    %343 = vmatprep.subr.bf16.mxu0 0
    %344 = vmatpush1.bf16.msra.mxu0 %v323
    %345 = vmatprep.subr.bf16.mxu0 0
    %346 = vmatpush1.bf16.msra.mxu0 %v324
    %347 = vmatprep.subr.bf16.mxu0 0
    %348 = vmatpush1.bf16.msra.mxu0 %v325
    %349 = vmatprep.subr.bf16.mxu0 0
    %350 = vmatpush1.bf16.msra.mxu0 %v326
    %351 = vmatprep.subr.bf16.mxu0 0
    %352 = vmatpush1.bf16.msra.mxu0 0
    %353 = vmatprep.subr.bf16.mxu0 0
    %354 = vmatpush1.bf16.msra.mxu0 0
    %355 = vmatprep.subr.bf16.mxu0 0
    %356 = vmatpush1.bf16.msra.mxu0 0
    %357 = vmatprep.subr.bf16.mxu0 0
    %358 = vmatpush1.bf16.msra.mxu0 0
    %359 = vmatprep.subr.bf16.mxu0 0
    %360 = vmatpush1.bf16.msra.mxu0 0
    %361 = vmatprep.subr.bf16.mxu0 0
    %362 = vmatpush1.bf16.msra.mxu0 0
    %363 = vmatprep.subr.bf16.mxu0 0
    %364 = vmatpush1.bf16.msra.mxu0 0
    %365 = vmatprep.subr.bf16.mxu0 0
    %366 = vmatpush1.bf16.msra.mxu0 0
    %367 = vmatprep.mubr.bf16.mxu0 0
    %368 = vmatmul.mubr.bf16.gmra.mrb[0].mxu0 %v279
    %v369 = vpop.f32.mrb[0].mxu0
    %v370 = vadd.f32 %v285, %v369
    %v371 = vpop.f32.mrb[0].mxu0
    %v372 = vpop.f32.mrb[0].mxu0
    %v373 = vpop.f32.mrb[0].mxu0
    %374 = vdwg.mxu0
    %375 = vadd.xlane.f32.xlu0 %v370
    %v376 = vpop.xlane.xlu0 %375
    %v377 = vmul.f32 %v376, 0.015625
    %v378 = vsub.f32 %v370, %v377
    %v379 = vsel %vm236, %v378, 0.0
    %v380 = vmul.f32 %v379, %v379
    %381 = vadd.xlane.f32.xlu0 %v380
    %v382 = vpop.xlane.xlu0 %381
    %v383 = vmul.f32 %v382, 0.015625
    %v384 = vadd.f32 %v383, 1e-05
    %v385 = vrsqrt.pop %v384
    %v386 = vmul.f32 %v379, %v385
    %v387 = vld [vmem:[%s7] sm:$0x1]
    %v389 = vlaneseq
    %v390 = vshrl.u32 %v389, 7
    %v391 = vsub.s32 0, %v390
    %v392 = vrot.slane %v387, %v391
    %v394 = vmul.f32 %v386, %v392
    %v395 = vld [vmem:[%s8] sm:$0x1]
    %v397 = vlaneseq
    %v398 = vshrl.u32 %v397, 7
    %v399 = vsub.s32 0, %v398
    %v400 = vrot.slane %v395, %v399
    %v402 = vadd.f32 %v394, %v400
    %v403 = vmax.f32 %v402, 0.0
    %v404 = vadd.f32 %v262, %v403
    %v405 = vld [vmem:[#allocation8] sm:$0xf]
    %v406 = vld [vmem:[#allocation8 + $0x4] sm:$0xf]
    %v407 = vld [vmem:[#allocation8 + $0x8] sm:$0xf]
    %v408 = vld [vmem:[#allocation8 + $0xc] sm:$0xf]
    %v409 = vld [vmem:[#allocation8 + $0x10] sm:$0xf]
    %v410 = vld [vmem:[#allocation8 + $0x14] sm:$0xf]
    %v411 = vld [vmem:[#allocation8 + $0x18] sm:$0xf]
    %v412 = vld [vmem:[#allocation8 + $0x1c] sm:$0xf]
    %v413 = vld [vmem:[#allocation8 + $0x20] sm:$0xf]
    %v414 = vld [vmem:[#allocation8 + $0x24] sm:$0xf]
    %v415 = vld [vmem:[#allocation8 + $0x28] sm:$0xf]
    %v416 = vld [vmem:[#allocation8 + $0x2c] sm:$0xf]
    %v417 = vld [vmem:[#allocation8 + $0x30] sm:$0xf]
    %v418 = vld [vmem:[#allocation8 + $0x34] sm:$0xf]
    %v419 = vld [vmem:[#allocation8 + $0x38] sm:$0xf]
    %v420 = vld [vmem:[#allocation8 + $0x3c] sm:$0xf]
    %v421 = vpack.c.bf16 %v404, %v404
    %v422 = vld [vmem:[%s10] sm:$0x1]
    %v424 = vlaneseq
    %v425 = vshrl.u32 %v424, 7
    %v426 = vsub.s32 0, %v425
    %v427 = vrot.slane %v422, %v426
    %v445 = vunpack.c.l.b16 %v405
    %v446 = vunpack.c.l.b16 %v406
    %v447 = vunpack.c.l.b16 %v407
    %v448 = vunpack.c.l.b16 %v408
    %v449 = vunpack.c.l.b16 %v409
    %v450 = vunpack.c.l.b16 %v410
    %v451 = vunpack.c.l.b16 %v411
    %v452 = vunpack.c.l.b16 %v412
    %v453 = vunpack.c.l.b16 %v413
    %v454 = vunpack.c.l.b16 %v414
    %v455 = vunpack.c.l.b16 %v415
    %v456 = vunpack.c.l.b16 %v416
    %v457 = vunpack.c.l.b16 %v417
    %v458 = vunpack.c.l.b16 %v418
    %v459 = vunpack.c.l.b16 %v419
    %v460 = vunpack.c.l.b16 %v420
    %v461 = vpack.c.b16 %v446, %v445
    %v462 = vpack.c.b16 %v448, %v447
    %v463 = vpack.c.b16 %v450, %v449
    %v464 = vpack.c.b16 %v452, %v451
    %v465 = vpack.c.b16 %v454, %v453
    %v466 = vpack.c.b16 %v456, %v455
    %v467 = vpack.c.b16 %v458, %v457
    %v468 = vpack.c.b16 %v460, %v459
    %477 = vmatprep.subr.bf16.mxu0 0
    %478 = vmatpush1.bf16.msra.mxu0 %v461
    %479 = vmatprep.subr.bf16.mxu0 0
    %480 = vmatpush1.bf16.msra.mxu0 %v462
    %481 = vmatprep.subr.bf16.mxu0 0
    %482 = vmatpush1.bf16.msra.mxu0 %v463
    %483 = vmatprep.subr.bf16.mxu0 0
    %484 = vmatpush1.bf16.msra.mxu0 %v464
    %485 = vmatprep.subr.bf16.mxu0 0
    %486 = vmatpush1.bf16.msra.mxu0 %v465
    %487 = vmatprep.subr.bf16.mxu0 0
    %488 = vmatpush1.bf16.msra.mxu0 %v466
    %489 = vmatprep.subr.bf16.mxu0 0
    %490 = vmatpush1.bf16.msra.mxu0 %v467
    %491 = vmatprep.subr.bf16.mxu0 0
    %492 = vmatpush1.bf16.msra.mxu0 %v468
    %493 = vmatprep.subr.bf16.mxu0 0
    %494 = vmatpush1.bf16.msra.mxu0 0
    %495 = vmatprep.subr.bf16.mxu0 0
    %496 = vmatpush1.bf16.msra.mxu0 0
    %497 = vmatprep.subr.bf16.mxu0 0
    %498 = vmatpush1.bf16.msra.mxu0 0
    %499 = vmatprep.subr.bf16.mxu0 0
    %500 = vmatpush1.bf16.msra.mxu0 0
    %501 = vmatprep.subr.bf16.mxu0 0
    %502 = vmatpush1.bf16.msra.mxu0 0
    %503 = vmatprep.subr.bf16.mxu0 0
    %504 = vmatpush1.bf16.msra.mxu0 0
    %505 = vmatprep.subr.bf16.mxu0 0
    %506 = vmatpush1.bf16.msra.mxu0 0
    %507 = vmatprep.subr.bf16.mxu0 0
    %508 = vmatpush1.bf16.msra.mxu0 0
    %509 = vmatprep.mubr.bf16.mxu0 0
    %510 = vmatmul.mubr.bf16.gmra.mrb[0].mxu0 %v421
    %v511 = vpop.f32.mrb[0].mxu0
    %v512 = vadd.f32 %v427, %v511
    %v513 = vpop.f32.mrb[0].mxu0
    %v514 = vpop.f32.mrb[0].mxu0
    %v515 = vpop.f32.mrb[0].mxu0
    %516 = vdwg.mxu0
    %517 = vadd.xlane.f32.xlu0 %v512
    %v518 = vpop.xlane.xlu0 %517
    %v519 = vmul.f32 %v518, 0.015625
    %v520 = vsub.f32 %v512, %v519
    %v521 = vsel %vm236, %v520, 0.0
    %v522 = vmul.f32 %v521, %v521
    %523 = vadd.xlane.f32.xlu0 %v522
    %v524 = vpop.xlane.xlu0 %523
    %v525 = vmul.f32 %v524, 0.015625
    %v526 = vadd.f32 %v525, 1e-05
    %v527 = vrsqrt.pop %v526
    %v528 = vmul.f32 %v521, %v527
    %v529 = vld [vmem:[%s11] sm:$0x1]
    %v531 = vlaneseq
    %v532 = vshrl.u32 %v531, 7
    %v533 = vsub.s32 0, %v532
    %v534 = vrot.slane %v529, %v533
    %v536 = vmul.f32 %v528, %v534
    %v537 = vld [vmem:[%s12] sm:$0x1]
    %v539 = vlaneseq
    %v540 = vshrl.u32 %v539, 7
    %v541 = vsub.s32 0, %v540
    %v542 = vrot.slane %v537, %v541
    %v544 = vadd.f32 %v536, %v542
    %v545 = vmax.f32 %v544, 0.0
    %v546 = vadd.f32 %v404, %v545
    %v547 = vld [vmem:[#allocation10] sm:$0xf]
    %v548 = vld [vmem:[#allocation10 + $0x4] sm:$0xf]
    %v549 = vld [vmem:[#allocation10 + $0x8] sm:$0xf]
    %v550 = vld [vmem:[#allocation10 + $0xc] sm:$0xf]
    %v551 = vld [vmem:[#allocation10 + $0x10] sm:$0xf]
    %v552 = vld [vmem:[#allocation10 + $0x14] sm:$0xf]
    %v553 = vld [vmem:[#allocation10 + $0x18] sm:$0xf]
    %v554 = vld [vmem:[#allocation10 + $0x1c] sm:$0xf]
    %v555 = vld [vmem:[#allocation10 + $0x20] sm:$0xf]
    %v556 = vld [vmem:[#allocation10 + $0x24] sm:$0xf]
    %v557 = vld [vmem:[#allocation10 + $0x28] sm:$0xf]
    %v558 = vld [vmem:[#allocation10 + $0x2c] sm:$0xf]
    %v559 = vld [vmem:[#allocation10 + $0x30] sm:$0xf]
    %v560 = vld [vmem:[#allocation10 + $0x34] sm:$0xf]
    %v561 = vld [vmem:[#allocation10 + $0x38] sm:$0xf]
    %v562 = vld [vmem:[#allocation10 + $0x3c] sm:$0xf]
    %v563 = vpack.c.bf16 %v546, %v546
    %v564 = vld [vmem:[%s14] sm:$0x1]
    %v566 = vlaneseq
    %v567 = vshrl.u32 %v566, 7
    %v568 = vsub.s32 0, %v567
    %v569 = vrot.slane %v564, %v568
    %v587 = vunpack.c.l.b16 %v547
    %v588 = vunpack.c.l.b16 %v548
    %v589 = vunpack.c.l.b16 %v549
    %v590 = vunpack.c.l.b16 %v550
    %v591 = vunpack.c.l.b16 %v551
    %v592 = vunpack.c.l.b16 %v552
    %v593 = vunpack.c.l.b16 %v553
    %v594 = vunpack.c.l.b16 %v554
    %v595 = vunpack.c.l.b16 %v555
    %v596 = vunpack.c.l.b16 %v556
    %v597 = vunpack.c.l.b16 %v557
    %v598 = vunpack.c.l.b16 %v558
    %v599 = vunpack.c.l.b16 %v559
    %v600 = vunpack.c.l.b16 %v560
    %v601 = vunpack.c.l.b16 %v561
    %v602 = vunpack.c.l.b16 %v562
    %v603 = vpack.c.b16 %v588, %v587
    %v604 = vpack.c.b16 %v590, %v589
    %v605 = vpack.c.b16 %v592, %v591
    %v606 = vpack.c.b16 %v594, %v593
    %v607 = vpack.c.b16 %v596, %v595
    %v608 = vpack.c.b16 %v598, %v597
    %v609 = vpack.c.b16 %v600, %v599
    %v610 = vpack.c.b16 %v602, %v601
    %619 = vmatprep.subr.bf16.mxu0 0
    %620 = vmatpush1.bf16.msra.mxu0 %v603
    %621 = vmatprep.subr.bf16.mxu0 0
    %622 = vmatpush1.bf16.msra.mxu0 %v604
    %623 = vmatprep.subr.bf16.mxu0 0
    %624 = vmatpush1.bf16.msra.mxu0 %v605
    %625 = vmatprep.subr.bf16.mxu0 0
    %626 = vmatpush1.bf16.msra.mxu0 %v606
    %627 = vmatprep.subr.bf16.mxu0 0
    %628 = vmatpush1.bf16.msra.mxu0 %v607
    %629 = vmatprep.subr.bf16.mxu0 0
    %630 = vmatpush1.bf16.msra.mxu0 %v608
    %631 = vmatprep.subr.bf16.mxu0 0
    %632 = vmatpush1.bf16.msra.mxu0 %v609
    %633 = vmatprep.subr.bf16.mxu0 0
    %634 = vmatpush1.bf16.msra.mxu0 %v610
    %635 = vmatprep.subr.bf16.mxu0 0
    %636 = vmatpush1.bf16.msra.mxu0 0
    %637 = vmatprep.subr.bf16.mxu0 0
    %638 = vmatpush1.bf16.msra.mxu0 0
    %639 = vmatprep.subr.bf16.mxu0 0
    %640 = vmatpush1.bf16.msra.mxu0 0
    %641 = vmatprep.subr.bf16.mxu0 0
    %642 = vmatpush1.bf16.msra.mxu0 0
    %643 = vmatprep.subr.bf16.mxu0 0
    %644 = vmatpush1.bf16.msra.mxu0 0
    %645 = vmatprep.subr.bf16.mxu0 0
    %646 = vmatpush1.bf16.msra.mxu0 0
    %647 = vmatprep.subr.bf16.mxu0 0
    %648 = vmatpush1.bf16.msra.mxu0 0
    %649 = vmatprep.subr.bf16.mxu0 0
    %650 = vmatpush1.bf16.msra.mxu0 0
    %651 = vmatprep.mubr.bf16.mxu0 0
    %652 = vmatmul.mubr.bf16.gmra.mrb[0].mxu0 %v563
    %v653 = vpop.f32.mrb[0].mxu0
    %v654 = vadd.f32 %v569, %v653
    %v655 = vpop.f32.mrb[0].mxu0
    %v656 = vpop.f32.mrb[0].mxu0
    %v657 = vpop.f32.mrb[0].mxu0
    %658 = vdwg.mxu0
    %659 = vst [vmem:[#allocation11] sm:$0xff] %v654
    // Predicated region
    $region82: #{tpu_custom_call.1} parent=1 // pred_check
      _
    $region83: #{tpu_custom_call.1} parent=1 // pred_check_branch
      %661 = sbr.rel (0) target = $region85
    $region84: #{tpu_custom_call.1} parent=1 // pred_region
      %s663 = ssub.s32 128, 128
      %664 = vsyncadd [#allocation4], %s663
      %s666 = sshll.u32 [#allocation11], 4
      %s667 = int_to_ptr.vmem [resolvable:$true] %s666
      %669 = dma.vmem_to_hbm [thread:$0]  %s667, 128, %s15, [#allocation4]
    $region85: #{tpu_custom_call.1} parent=1 // pred_fallthru
      _
    // Predicated region
    $region86: #{tpu_custom_call.1} parent=1 // pred_check
      _
    $region87: #{tpu_custom_call.1} parent=1 // pred_check_branch
      %671 = sbr.rel (0) target = $region89
    $region88: #{tpu_custom_call.1} parent=1 // pred_region
      %672 = dma.done [#allocation4], 128
    $region89: #{tpu_custom_call.1} parent=1 // pred_fallthru
      _
    %673 = vsyncpa [#allocation3], 1
    %674 = vsyncpa [#allocation6], 1
    %675 = vsyncpa [#allocation9], 1
    %676 = vsyncpa [#allocation4], 1

// kernel: tpu_custom_call.1
$region0: #{tpu_custom_call.1}
  #allocation0 [shape = 'u32[]', space=smem, size = 0x4, offset = 0x4, fixed_abs, tag = 'smem constant byte address 0x4 - core index']
  #allocation1 [shape = 'u32[144,128]{1,0:T(1,128)}', space=vmem, size = 0x12000, scoped, tag = 'internal scratch']
  %s0 = inlined_call_operand.hbm [shape: f32[8,128], index: 0, kind: input, shape index: {}]
  %s1 = inlined_call_operand.hbm [shape: bf16[128,128], index: 1, kind: input, shape index: {}]
  %s2 = inlined_call_operand.vmem [shape: f32[1,128], index: 2, kind: input, shape index: {}]
  %s3 = inlined_call_operand.vmem [shape: f32[1,128], index: 3, kind: input, shape index: {}]
  %s4 = inlined_call_operand.vmem [shape: f32[1,128], index: 4, kind: input, shape index: {}]
  %s5 = inlined_call_operand.hbm [shape: bf16[128,128], index: 5, kind: input, shape index: {}]
  %s6 = inlined_call_operand.vmem [shape: f32[1,128], index: 6, kind: input, shape index: {}]
  %s7 = inlined_call_operand.vmem [shape: f32[1,128], index: 7, kind: input, shape index: {}]
  %s8 = inlined_call_operand.vmem [shape: f32[1,128], index: 8, kind: input, shape index: {}]
  %s9 = inlined_call_operand.hbm [shape: bf16[128,128], index: 9, kind: input, shape index: {}]
  %s10 = inlined_call_operand.vmem [shape: f32[1,128], index: 10, kind: input, shape index: {}]
  %s11 = inlined_call_operand.vmem [shape: f32[1,128], index: 11, kind: input, shape index: {}]
  %s12 = inlined_call_operand.vmem [shape: f32[1,128], index: 12, kind: input, shape index: {}]
  %s13 = inlined_call_operand.hbm [shape: bf16[128,128], index: 13, kind: input, shape index: {}]
  %s14 = inlined_call_operand.vmem [shape: f32[1,128], index: 14, kind: input, shape index: {}]
  %s15 = inlined_call_operand.hbm [shape: f32[8,128], index: 15, kind: output, shape index: {}]
  %s16 = sld [smem:[#allocation0]]
  $region90: #{tpu_custom_call.1} parent=0
    _
  %s18 = ssub.s32 1, %s16
  %s19 = scalar_select 0, %s18, %s16
  $region1: #{tpu_custom_call.1} parent=0
    #allocation2 [shape = 'u8[4096]{0}', space=vmem, size = 0x1000, scoped, tag = 'input window, operand 0, single buffered']
    #allocation3 [shape = 's32[1]{0}', space=sflag, size = 0x4, scoped, tag = 'scoped memory for tpu_custom_call.1']
    #allocation4 [shape = 's32[1]{0}', space=sflag, size = 0x4, scoped, tag = 'scoped memory for tpu_custom_call.1']
    #allocation5 [shape = 'u8[32768]{0}', space=vmem, size = 0x8000, scoped, tag = 'input window, operand 1, single buffered']
    #allocation6 [shape = 's32[1]{0}', space=sflag, size = 0x4, scoped, tag = 'scoped memory for tpu_custom_call.1']
    #allocation7 [shape = 'u8[32768]{0}', space=vmem, size = 0x8000, scoped, tag = 'input window, operand 5, single buffered']
    #allocation8 [shape = 'u8[32768]{0}', space=vmem, size = 0x8000, scoped, tag = 'input window, operand 9, single buffered']
    #allocation9 [shape = 's32[1]{0}', space=sflag, size = 0x4, scoped, tag = 'scoped memory for tpu_custom_call.1']
    #allocation10 [shape = 'u8[32768]{0}', space=vmem, size = 0x8000, scoped, tag = 'input window, operand 13, single buffered']
    #allocation11 [shape = 'u8[4096]{0}', space=vmem, size = 0x1000, scoped, tag = 'output window, operand 0, single buffered']
    %20 = vsyncpa [#allocation3], 0
    %21 = vsyncpa [#allocation6], 0
    %22 = vsyncpa [#allocation9], 0
    %23 = vsyncpa [#allocation4], 0
    // Predicated region
    $region2: #{tpu_custom_call.1} parent=1 // pred_check
      _
    $region3: #{tpu_custom_call.1} parent=1 // pred_check_branch
      %25 = sbr.rel (0) target = $region5
    $region4: #{tpu_custom_call.1} parent=1 // pred_region
      %s27 = ssub.s32 128, 128
      %28 = vsyncadd [#allocation3], %s27
      %s30 = sshll.u32 [#allocation2], 4
      %s31 = int_to_ptr.vmem [resolvable:$true] %s30
      %33 = dma.hbm_to_vmem [thread:$0]  %s0, 128, %s31, [#allocation3]
    $region5: #{tpu_custom_call.1} parent=1 // pred_fallthru
      _
    // Predicated region
    $region6: #{tpu_custom_call.1} parent=1 // pred_check
      _
    $region7: #{tpu_custom_call.1} parent=1 // pred_check_branch
      %35 = sbr.rel (0) target = $region9
    $region8: #{tpu_custom_call.1} parent=1 // pred_region
      %s37 = ssub.s32 1024, 1024
      %38 = vsyncadd [#allocation6], %s37
      %s39 = sshll.u32 [#allocation5], 4
      %s40 = int_to_ptr.vmem [resolvable:$true] %s39
      %45 = dma.hbm_to_vmem [thread:$0]  %s1, 1024, %s40, [#allocation6], 64, 64, 4
    $region9: #{tpu_custom_call.1} parent=1 // pred_fallthru
      _
    // Predicated region
    $region10: #{tpu_custom_call.1} parent=1 // pred_check
      _
    $region11: #{tpu_custom_call.1} parent=1 // pred_check_branch
      %47 = sbr.rel (0) target = $region13
    $region12: #{tpu_custom_call.1} parent=1 // pred_region
      _
    $region13: #{tpu_custom_call.1} parent=1 // pred_fallthru
      _
    // Predicated region
    $region14: #{tpu_custom_call.1} parent=1 // pred_check
      _
    $region15: #{tpu_custom_call.1} parent=1 // pred_check_branch
      %49 = sbr.rel (0) target = $region17
    $region16: #{tpu_custom_call.1} parent=1 // pred_region
      _
    $region17: #{tpu_custom_call.1} parent=1 // pred_fallthru
      _
    // Predicated region
    $region18: #{tpu_custom_call.1} parent=1 // pred_check
      _
    $region19: #{tpu_custom_call.1} parent=1 // pred_check_branch
      %51 = sbr.rel (0) target = $region21
    $region20: #{tpu_custom_call.1} parent=1 // pred_region
      _
    $region21: #{tpu_custom_call.1} parent=1 // pred_fallthru
      _
    // Predicated region
    $region22: #{tpu_custom_call.1} parent=1 // pred_check
      _
    $region23: #{tpu_custom_call.1} parent=1 // pred_check_branch
      %53 = sbr.rel (0) target = $region25
    $region24: #{tpu_custom_call.1} parent=1 // pred_region
      %s55 = ssub.s32 1024, 1024
      %56 = vsyncadd [#allocation6], %s55
      %s57 = sshll.u32 [#allocation7], 4
      %s58 = int_to_ptr.vmem [resolvable:$true] %s57
      %63 = dma.hbm_to_vmem [thread:$0]  %s5, 1024, %s58, [#allocation6], 64, 64, 4
    $region25: #{tpu_custom_call.1} parent=1 // pred_fallthru
      _
    // Predicated region
    $region26: #{tpu_custom_call.1} parent=1 // pred_check
      _
    $region27: #{tpu_custom_call.1} parent=1 // pred_check_branch
      %65 = sbr.rel (0) target = $region29
    $region28: #{tpu_custom_call.1} parent=1 // pred_region
      _
    $region29: #{tpu_custom_call.1} parent=1 // pred_fallthru
      _
    // Predicated region
    $region30: #{tpu_custom_call.1} parent=1 // pred_check
      _
    $region31: #{tpu_custom_call.1} parent=1 // pred_check_branch
      %67 = sbr.rel (0) target = $region33
    $region32: #{tpu_custom_call.1} parent=1 // pred_region
      _
    $region33: #{tpu_custom_call.1} parent=1 // pred_fallthru
      _
    // Predicated region
    $region34: #{tpu_custom_call.1} parent=1 // pred_check
      _
    $region35: #{tpu_custom_call.1} parent=1 // pred_check_branch
      %69 = sbr.rel (0) target = $region37
    $region36: #{tpu_custom_call.1} parent=1 // pred_region
      _
    $region37: #{tpu_custom_call.1} parent=1 // pred_fallthru
      _
    // Predicated region
    $region38: #{tpu_custom_call.1} parent=1 // pred_check
      _
    $region39: #{tpu_custom_call.1} parent=1 // pred_check_branch
      %71 = sbr.rel (0) target = $region41
    $region40: #{tpu_custom_call.1} parent=1 // pred_region
      %s73 = ssub.s32 1024, 1024
      %74 = vsyncadd [#allocation9], %s73
      %s75 = sshll.u32 [#allocation8], 4
      %s76 = int_to_ptr.vmem [resolvable:$true] %s75
      %81 = dma.hbm_to_vmem [thread:$0]  %s9, 1024, %s76, [#allocation9], 64, 64, 4
    $region41: #{tpu_custom_call.1} parent=1 // pred_fallthru
      _
    // Predicated region
    $region42: #{tpu_custom_call.1} parent=1 // pred_check
      _
    $region43: #{tpu_custom_call.1} parent=1 // pred_check_branch
      %83 = sbr.rel (0) target = $region45
    $region44: #{tpu_custom_call.1} parent=1 // pred_region
      _
    $region45: #{tpu_custom_call.1} parent=1 // pred_fallthru
      _
    // Predicated region
    $region46: #{tpu_custom_call.1} parent=1 // pred_check
      _
    $region47: #{tpu_custom_call.1} parent=1 // pred_check_branch
      %85 = sbr.rel (0) target = $region49
    $region48: #{tpu_custom_call.1} parent=1 // pred_region
      _
    $region49: #{tpu_custom_call.1} parent=1 // pred_fallthru
      _
    // Predicated region
    $region50: #{tpu_custom_call.1} parent=1 // pred_check
      _
    $region51: #{tpu_custom_call.1} parent=1 // pred_check_branch
      %87 = sbr.rel (0) target = $region53
    $region52: #{tpu_custom_call.1} parent=1 // pred_region
      _
    $region53: #{tpu_custom_call.1} parent=1 // pred_fallthru
      _
    // Predicated region
    $region54: #{tpu_custom_call.1} parent=1 // pred_check
      _
    $region55: #{tpu_custom_call.1} parent=1 // pred_check_branch
      %89 = sbr.rel (0) target = $region57
    $region56: #{tpu_custom_call.1} parent=1 // pred_region
      %s91 = ssub.s32 1024, 1024
      %92 = vsyncadd [#allocation9], %s91
      %s93 = sshll.u32 [#allocation10], 4
      %s94 = int_to_ptr.vmem [resolvable:$true] %s93
      %99 = dma.hbm_to_vmem [thread:$0]  %s13, 1024, %s94, [#allocation9], 64, 64, 4
    $region57: #{tpu_custom_call.1} parent=1 // pred_fallthru
      _
    // Predicated region
    $region58: #{tpu_custom_call.1} parent=1 // pred_check
      _
    $region59: #{tpu_custom_call.1} parent=1 // pred_check_branch
      %101 = sbr.rel (0) target = $region61
    $region60: #{tpu_custom_call.1} parent=1 // pred_region
      _
    $region61: #{tpu_custom_call.1} parent=1 // pred_fallthru
      _
    // Predicated region
    $region62: #{tpu_custom_call.1} parent=1 // pred_check
      _
    $region63: #{tpu_custom_call.1} parent=1 // pred_check_branch
      %103 = sbr.rel (0) target = $region65
    $region64: #{tpu_custom_call.1} parent=1 // pred_region
      %104 = dma.done [#allocation3], 128
    $region65: #{tpu_custom_call.1} parent=1 // pred_fallthru
      _
    // Predicated region
    $region66: #{tpu_custom_call.1} parent=1 // pred_check
      _
    $region67: #{tpu_custom_call.1} parent=1 // pred_check_branch
      %106 = sbr.rel (0) target = $region69
    $region68: #{tpu_custom_call.1} parent=1 // pred_region
      %107 = dma.done [#allocation6], 1024
    $region69: #{tpu_custom_call.1} parent=1 // pred_fallthru
      _
    // Predicated region
    $region70: #{tpu_custom_call.1} parent=1 // pred_check
      _
    $region71: #{tpu_custom_call.1} parent=1 // pred_check_branch
      %109 = sbr.rel (0) target = $region73
    $region72: #{tpu_custom_call.1} parent=1 // pred_region
      %110 = dma.done [#allocation6], 1024
    $region73: #{tpu_custom_call.1} parent=1 // pred_fallthru
      _
    // Predicated region
    $region74: #{tpu_custom_call.1} parent=1 // pred_check
      _
    $region75: #{tpu_custom_call.1} parent=1 // pred_check_branch
      %112 = sbr.rel (0) target = $region77
    $region76: #{tpu_custom_call.1} parent=1 // pred_region
      %113 = dma.done [#allocation9], 1024
    $region77: #{tpu_custom_call.1} parent=1 // pred_fallthru
      _
    // Predicated region
    $region78: #{tpu_custom_call.1} parent=1 // pred_check
      _
    $region79: #{tpu_custom_call.1} parent=1 // pred_check_branch
      %115 = sbr.rel (0) target = $region81
    $region80: #{tpu_custom_call.1} parent=1 // pred_region
      %116 = dma.done [#allocation9], 1024
    $region81: #{tpu_custom_call.1} parent=1 // pred_fallthru
      _
    %v118 = vld [vmem:[#allocation2] sm:$0xff]
    %v119 = vld [vmem:[#allocation5] sm:$0xf]
    %v120 = vld [vmem:[#allocation5 + $0x4] sm:$0xf]
    %v121 = vld [vmem:[#allocation5 + $0x8] sm:$0xf]
    %v122 = vld [vmem:[#allocation5 + $0xc] sm:$0xf]
    %v123 = vld [vmem:[#allocation5 + $0x10] sm:$0xf]
    %v124 = vld [vmem:[#allocation5 + $0x14] sm:$0xf]
    %v125 = vld [vmem:[#allocation5 + $0x18] sm:$0xf]
    %v126 = vld [vmem:[#allocation5 + $0x1c] sm:$0xf]
    %v127 = vld [vmem:[#allocation5 + $0x20] sm:$0xf]
    %v128 = vld [vmem:[#allocation5 + $0x24] sm:$0xf]
    %v129 = vld [vmem:[#allocation5 + $0x28] sm:$0xf]
    %v130 = vld [vmem:[#allocation5 + $0x2c] sm:$0xf]
    %v131 = vld [vmem:[#allocation5 + $0x30] sm:$0xf]
    %v132 = vld [vmem:[#allocation5 + $0x34] sm:$0xf]
    %v133 = vld [vmem:[#allocation5 + $0x38] sm:$0xf]
    %v134 = vld [vmem:[#allocation5 + $0x3c] sm:$0xf]
    %v135 = vpack.c.bf16 %v118, %v118
    %v136 = vld [vmem:[%s2] sm:$0x1]
    %v138 = vlaneseq
    %v139 = vshrl.u32 %v138, 7
    %v140 = vsub.s32 0, %v139
    %v141 = vrot.slane %v136, %v140
    %v159 = vunpack.c.l.b16 %v119
    %v160 = vunpack.c.l.b16 %v120
    %v161 = vunpack.c.l.b16 %v121
    %v162 = vunpack.c.l.b16 %v122
    %v163 = vunpack.c.l.b16 %v123
    %v164 = vunpack.c.l.b16 %v124
    %v165 = vunpack.c.l.b16 %v125
    %v166 = vunpack.c.l.b16 %v126
    %v167 = vunpack.c.l.b16 %v127
    %v168 = vunpack.c.l.b16 %v128
    %v169 = vunpack.c.l.b16 %v129
    %v170 = vunpack.c.l.b16 %v130
    %v171 = vunpack.c.l.b16 %v131
    %v172 = vunpack.c.l.b16 %v132
    %v173 = vunpack.c.l.b16 %v133
    %v174 = vunpack.c.l.b16 %v134
    %v175 = vpack.c.b16 %v160, %v159
    %v176 = vpack.c.b16 %v162, %v161
    %v177 = vpack.c.b16 %v164, %v163
    %v178 = vpack.c.b16 %v166, %v165
    %v179 = vpack.c.b16 %v168, %v167
    %v180 = vpack.c.b16 %v170, %v169
    %v181 = vpack.c.b16 %v172, %v171
    %v182 = vpack.c.b16 %v174, %v173
    %191 = vmatprep.subr.bf16.mxu0 0
    %192 = vmatpush1.bf16.msra.mxu0 %v175
    %193 = vmatprep.subr.bf16.mxu0 0
    %194 = vmatpush1.bf16.msra.mxu0 %v176
    %195 = vmatprep.subr.bf16.mxu0 0
    %196 = vmatpush1.bf16.msra.mxu0 %v177
    %197 = vmatprep.subr.bf16.mxu0 0
    %198 = vmatpush1.bf16.msra.mxu0 %v178
    %199 = vmatprep.subr.bf16.mxu0 0
    %200 = vmatpush1.bf16.msra.mxu0 %v179
    %201 = vmatprep.subr.bf16.mxu0 0
    %202 = vmatpush1.bf16.msra.mxu0 %v180
    %203 = vmatprep.subr.bf16.mxu0 0
    %204 = vmatpush1.bf16.msra.mxu0 %v181
    %205 = vmatprep.subr.bf16.mxu0 0
    %206 = vmatpush1.bf16.msra.mxu0 %v182
    %207 = vmatprep.subr.bf16.mxu0 0
    %208 = vmatpush1.bf16.msra.mxu0 0
    %209 = vmatprep.subr.bf16.mxu0 0
    %210 = vmatpush1.bf16.msra.mxu0 0
    %211 = vmatprep.subr.bf16.mxu0 0
    %212 = vmatpush1.bf16.msra.mxu0 0
    %213 = vmatprep.subr.bf16.mxu0 0
    %214 = vmatpush1.bf16.msra.mxu0 0
    %215 = vmatprep.subr.bf16.mxu0 0
    %216 = vmatpush1.bf16.msra.mxu0 0
    %217 = vmatprep.subr.bf16.mxu0 0
    %218 = vmatpush1.bf16.msra.mxu0 0
    %219 = vmatprep.subr.bf16.mxu0 0
    %220 = vmatpush1.bf16.msra.mxu0 0
    %221 = vmatprep.subr.bf16.mxu0 0
    %222 = vmatpush1.bf16.msra.mxu0 0
    %223 = vmatprep.mubr.bf16.mxu0 0
    %224 = vmatmul.mubr.bf16.gmra.mrb[0].mxu0 %v135
    %v225 = vpop.f32.mrb[0].mxu0
    %v226 = vadd.f32 %v141, %v225
    %v227 = vpop.f32.mrb[0].mxu0
    %v228 = vpop.f32.mrb[0].mxu0
    %v229 = vpop.f32.mrb[0].mxu0
    %230 = vdwg.mxu0
    %231 = vadd.xlane.f32.xlu0 %v226
    %v232 = vpop.xlane.xlu0 %231
    %v233 = vmul.f32 %v232, 0.015625
    %v234 = vlaneseq
    %v235 = vand.u32 %v234, 127
    %vm236 = vcmp.lt.s32.totalorder %v235, 64
    %v237 = vsub.f32 %v226, %v233
    %v238 = vsel %vm236, %v237, 0.0
    %v239 = vmul.f32 %v238, %v238
    %240 = vadd.xlane.f32.xlu0 %v239
    %v241 = vpop.xlane.xlu0 %240
    %v242 = vmul.f32 %v241, 0.015625
    %v243 = vadd.f32 %v242, 1e-05
    %v244 = vrsqrt.pop %v243
    %v245 = vmul.f32 %v238, %v244
    %v246 = vld [vmem:[%s3] sm:$0x1]
    %v248 = vlaneseq
    %v249 = vshrl.u32 %v248, 7
    %v250 = vsub.s32 0, %v249
    %v251 = vrot.slane %v246, %v250
    %v253 = vmul.f32 %v245, %v251
    %v254 = vld [vmem:[%s4] sm:$0x1]
    %v256 = vlaneseq
    %v257 = vshrl.u32 %v256, 7
    %v258 = vsub.s32 0, %v257
    %v259 = vrot.slane %v254, %v258
    %v261 = vadd.f32 %v253, %v259
    %v262 = vmax.f32 %v261, 0.0
    %v263 = vld [vmem:[#allocation7] sm:$0xf]
    %v264 = vld [vmem:[#allocation7 + $0x4] sm:$0xf]
    %v265 = vld [vmem:[#allocation7 + $0x8] sm:$0xf]
    %v266 = vld [vmem:[#allocation7 + $0xc] sm:$0xf]
    %v267 = vld [vmem:[#allocation7 + $0x10] sm:$0xf]
    %v268 = vld [vmem:[#allocation7 + $0x14] sm:$0xf]
    %v269 = vld [vmem:[#allocation7 + $0x18] sm:$0xf]
    %v270 = vld [vmem:[#allocation7 + $0x1c] sm:$0xf]
    %v271 = vld [vmem:[#allocation7 + $0x20] sm:$0xf]
    %v272 = vld [vmem:[#allocation7 + $0x24] sm:$0xf]
    %v273 = vld [vmem:[#allocation7 + $0x28] sm:$0xf]
    %v274 = vld [vmem:[#allocation7 + $0x2c] sm:$0xf]
    %v275 = vld [vmem:[#allocation7 + $0x30] sm:$0xf]
    %v276 = vld [vmem:[#allocation7 + $0x34] sm:$0xf]
    %v277 = vld [vmem:[#allocation7 + $0x38] sm:$0xf]
    %v278 = vld [vmem:[#allocation7 + $0x3c] sm:$0xf]
    %v279 = vpack.c.bf16 %v262, %v262
    %v280 = vld [vmem:[%s6] sm:$0x1]
    %v282 = vlaneseq
    %v283 = vshrl.u32 %v282, 7
    %v284 = vsub.s32 0, %v283
    %v285 = vrot.slane %v280, %v284
    %v303 = vunpack.c.l.b16 %v263
    %v304 = vunpack.c.l.b16 %v264
    %v305 = vunpack.c.l.b16 %v265
    %v306 = vunpack.c.l.b16 %v266
    %v307 = vunpack.c.l.b16 %v267
    %v308 = vunpack.c.l.b16 %v268
    %v309 = vunpack.c.l.b16 %v269
    %v310 = vunpack.c.l.b16 %v270
    %v311 = vunpack.c.l.b16 %v271
    %v312 = vunpack.c.l.b16 %v272
    %v313 = vunpack.c.l.b16 %v273
    %v314 = vunpack.c.l.b16 %v274
    %v315 = vunpack.c.l.b16 %v275
    %v316 = vunpack.c.l.b16 %v276
    %v317 = vunpack.c.l.b16 %v277
    %v318 = vunpack.c.l.b16 %v278
    %v319 = vpack.c.b16 %v304, %v303
    %v320 = vpack.c.b16 %v306, %v305
    %v321 = vpack.c.b16 %v308, %v307
    %v322 = vpack.c.b16 %v310, %v309
    %v323 = vpack.c.b16 %v312, %v311
    %v324 = vpack.c.b16 %v314, %v313
    %v325 = vpack.c.b16 %v316, %v315
    %v326 = vpack.c.b16 %v318, %v317
    %335 = vmatprep.subr.bf16.mxu0 0
    %336 = vmatpush1.bf16.msra.mxu0 %v319
    %337 = vmatprep.subr.bf16.mxu0 0
    %338 = vmatpush1.bf16.msra.mxu0 %v320
    %339 = vmatprep.subr.bf16.mxu0 0
    %340 = vmatpush1.bf16.msra.mxu0 %v321
    %341 = vmatprep.subr.bf16.mxu0 0
    %342 = vmatpush1.bf16.msra.mxu0 %v322
    %343 = vmatprep.subr.bf16.mxu0 0
    %344 = vmatpush1.bf16.msra.mxu0 %v323
    %345 = vmatprep.subr.bf16.mxu0 0
    %346 = vmatpush1.bf16.msra.mxu0 %v324
    %347 = vmatprep.subr.bf16.mxu0 0
    %348 = vmatpush1.bf16.msra.mxu0 %v325
    %349 = vmatprep.subr.bf16.mxu0 0
    %350 = vmatpush1.bf16.msra.mxu0 %v326
    %351 = vmatprep.subr.bf16.mxu0 0
    %352 = vmatpush1.bf16.msra.mxu0 0
    %353 = vmatprep.subr.bf16.mxu0 0
    %354 = vmatpush1.bf16.msra.mxu0 0
    %355 = vmatprep.subr.bf16.mxu0 0
    %356 = vmatpush1.bf16.msra.mxu0 0
    %357 = vmatprep.subr.bf16.mxu0 0
    %358 = vmatpush1.bf16.msra.mxu0 0
    %359 = vmatprep.subr.bf16.mxu0 0
    %360 = vmatpush1.bf16.msra.mxu0 0
    %361 = vmatprep.subr.bf16.mxu0 0
    %362 = vmatpush1.bf16.msra.mxu0 0
    %363 = vmatprep.subr.bf16.mxu0 0
    %364 = vmatpush1.bf16.msra.mxu0 0
    %365 = vmatprep.subr.bf16.mxu0 0
    %366 = vmatpush1.bf16.msra.mxu0 0
    %367 = vmatprep.mubr.bf16.mxu0 0
    %368 = vmatmul.mubr.bf16.gmra.mrb[0].mxu0 %v279
    %v369 = vpop.f32.mrb[0].mxu0
    %v370 = vadd.f32 %v285, %v369
    %v371 = vpop.f32.mrb[0].mxu0
    %v372 = vpop.f32.mrb[0].mxu0
    %v373 = vpop.f32.mrb[0].mxu0
    %374 = vdwg.mxu0
    %375 = vadd.xlane.f32.xlu0 %v370
    %v376 = vpop.xlane.xlu0 %375
    %v377 = vmul.f32 %v376, 0.015625
    %v378 = vsub.f32 %v370, %v377
    %v379 = vsel %vm236, %v378, 0.0
    %v380 = vmul.f32 %v379, %v379
    %381 = vadd.xlane.f32.xlu0 %v380
    %v382 = vpop.xlane.xlu0 %381
    %v383 = vmul.f32 %v382, 0.015625
    %v384 = vadd.f32 %v383, 1e-05
    %v385 = vrsqrt.pop %v384
    %v386 = vmul.f32 %v379, %v385
    %v387 = vld [vmem:[%s7] sm:$0x1]
    %v389 = vlaneseq
    %v390 = vshrl.u32 %v389, 7
    %v391 = vsub.s32 0, %v390
    %v392 = vrot.slane %v387, %v391
    %v394 = vmul.f32 %v386, %v392
    %v395 = vld [vmem:[%s8] sm:$0x1]
    %v397 = vlaneseq
    %v398 = vshrl.u32 %v397, 7
    %v399 = vsub.s32 0, %v398
    %v400 = vrot.slane %v395, %v399
    %v402 = vadd.f32 %v394, %v400
    %v403 = vmax.f32 %v402, 0.0
    %v404 = vadd.f32 %v262, %v403
    %v405 = vld [vmem:[#allocation8] sm:$0xf]
    %v406 = vld [vmem:[#allocation8 + $0x4] sm:$0xf]
    %v407 = vld [vmem:[#allocation8 + $0x8] sm:$0xf]
    %v408 = vld [vmem:[#allocation8 + $0xc] sm:$0xf]
    %v409 = vld [vmem:[#allocation8 + $0x10] sm:$0xf]
    %v410 = vld [vmem:[#allocation8 + $0x14] sm:$0xf]
    %v411 = vld [vmem:[#allocation8 + $0x18] sm:$0xf]
    %v412 = vld [vmem:[#allocation8 + $0x1c] sm:$0xf]
    %v413 = vld [vmem:[#allocation8 + $0x20] sm:$0xf]
    %v414 = vld [vmem:[#allocation8 + $0x24] sm:$0xf]
    %v415 = vld [vmem:[#allocation8 + $0x28] sm:$0xf]
    %v416 = vld [vmem:[#allocation8 + $0x2c] sm:$0xf]
    %v417 = vld [vmem:[#allocation8 + $0x30] sm:$0xf]
    %v418 = vld [vmem:[#allocation8 + $0x34] sm:$0xf]
    %v419 = vld [vmem:[#allocation8 + $0x38] sm:$0xf]
    %v420 = vld [vmem:[#allocation8 + $0x3c] sm:$0xf]
    %v421 = vpack.c.bf16 %v404, %v404
    %v422 = vld [vmem:[%s10] sm:$0x1]
    %v424 = vlaneseq
    %v425 = vshrl.u32 %v424, 7
    %v426 = vsub.s32 0, %v425
    %v427 = vrot.slane %v422, %v426
    %v445 = vunpack.c.l.b16 %v405
    %v446 = vunpack.c.l.b16 %v406
    %v447 = vunpack.c.l.b16 %v407
    %v448 = vunpack.c.l.b16 %v408
    %v449 = vunpack.c.l.b16 %v409
    %v450 = vunpack.c.l.b16 %v410
    %v451 = vunpack.c.l.b16 %v411
    %v452 = vunpack.c.l.b16 %v412
    %v453 = vunpack.c.l.b16 %v413
    %v454 = vunpack.c.l.b16 %v414
    %v455 = vunpack.c.l.b16 %v415
    %v456 = vunpack.c.l.b16 %v416
    %v457 = vunpack.c.l.b16 %v417
    %v458 = vunpack.c.l.b16 %v418
    %v459 = vunpack.c.l.b16 %v419
    %v460 = vunpack.c.l.b16 %v420
    %v461 = vpack.c.b16 %v446, %v445
    %v462 = vpack.c.b16 %v448, %v447
    %v463 = vpack.c.b16 %v450, %v449
    %v464 = vpack.c.b16 %v452, %v451
    %v465 = vpack.c.b16 %v454, %v453
    %v466 = vpack.c.b16 %v456, %v455
    %v467 = vpack.c.b16 %v458, %v457
    %v468 = vpack.c.b16 %v460, %v459
    %477 = vmatprep.subr.bf16.mxu0 0
    %478 = vmatpush1.bf16.msra.mxu0 %v461
    %479 = vmatprep.subr.bf16.mxu0 0
    %480 = vmatpush1.bf16.msra.mxu0 %v462
    %481 = vmatprep.subr.bf16.mxu0 0
    %482 = vmatpush1.bf16.msra.mxu0 %v463
    %483 = vmatprep.subr.bf16.mxu0 0
    %484 = vmatpush1.bf16.msra.mxu0 %v464
    %485 = vmatprep.subr.bf16.mxu0 0
    %486 = vmatpush1.bf16.msra.mxu0 %v465
    %487 = vmatprep.subr.bf16.mxu0 0
    %488 = vmatpush1.bf16.msra.mxu0 %v466
    %489 = vmatprep.subr.bf16.mxu0 0
    %490 = vmatpush1.bf16.msra.mxu0 %v467
    %491 = vmatprep.subr.bf16.mxu0 0
    %492 = vmatpush1.bf16.msra.mxu0 %v468
    %493 = vmatprep.subr.bf16.mxu0 0
    %494 = vmatpush1.bf16.msra.mxu0 0
    %495 = vmatprep.subr.bf16.mxu0 0
    %496 = vmatpush1.bf16.msra.mxu0 0
    %497 = vmatprep.subr.bf16.mxu0 0
    %498 = vmatpush1.bf16.msra.mxu0 0
    %499 = vmatprep.subr.bf16.mxu0 0
    %500 = vmatpush1.bf16.msra.mxu0 0
    %501 = vmatprep.subr.bf16.mxu0 0
    %502 = vmatpush1.bf16.msra.mxu0 0
    %503 = vmatprep.subr.bf16.mxu0 0
    %504 = vmatpush1.bf16.msra.mxu0 0
    %505 = vmatprep.subr.bf16.mxu0 0
    %506 = vmatpush1.bf16.msra.mxu0 0
    %507 = vmatprep.subr.bf16.mxu0 0
    %508 = vmatpush1.bf16.msra.mxu0 0
    %509 = vmatprep.mubr.bf16.mxu0 0
    %510 = vmatmul.mubr.bf16.gmra.mrb[0].mxu0 %v421
    %v511 = vpop.f32.mrb[0].mxu0
    %v512 = vadd.f32 %v427, %v511
    %v513 = vpop.f32.mrb[0].mxu0
    %v514 = vpop.f32.mrb[0].mxu0
    %v515 = vpop.f32.mrb[0].mxu0
    %516 = vdwg.mxu0
    %517 = vadd.xlane.f32.xlu0 %v512
    %v518 = vpop.xlane.xlu0 %517
    %v519 = vmul.f32 %v518, 0.015625
    %v520 = vsub.f32 %v512, %v519
    %v521 = vsel %vm236, %v520, 0.0
    %v522 = vmul.f32 %v521, %v521
    %523 = vadd.xlane.f32.xlu0 %v522
    %v524 = vpop.xlane.xlu0 %523
    %v525 = vmul.f32 %v524, 0.015625
    %v526 = vadd.f32 %v525, 1e-05
    %v527 = vrsqrt.pop %v526
    %v528 = vmul.f32 %v521, %v527
    %v529 = vld [vmem:[%s11] sm:$0x1]
    %v531 = vlaneseq
    %v532 = vshrl.u32 %v531, 7
    %v533 = vsub.s32 0, %v532
    %v534 = vrot.slane %v529, %v533
    %v536 = vmul.f32 %v528, %v534
    %v537 = vld [vmem:[%s12] sm:$0x1]
    %v539 = vlaneseq
    %v540 = vshrl.u32 %v539, 7
    %v541 = vsub.s32 0, %v540
    %v542 = vrot.slane %v537, %v541
    %v544 = vadd.f32 %v536, %v542
    %v545 = vmax.f32 %v544, 0.0
    %v546 = vadd.f32 %v404, %v545
    %v547 = vld [vmem:[#allocation10] sm:$0xf]
    %v548 = vld [vmem:[#allocation10 + $0x4] sm:$0xf]
    %v549 = vld [vmem:[#allocation10 + $0x8] sm:$0xf]
    %v550 = vld [vmem:[#allocation10 + $0xc] sm:$0xf]
    %v551 = vld [vmem:[#allocation10 + $0x10] sm:$0xf]
    %v552 = vld [vmem:[#allocation10 + $0x14] sm:$0xf]
    %v553 = vld [vmem:[#allocation10 + $0x18] sm:$0xf]
    %v554 = vld [vmem:[#allocation10 + $0x1c] sm:$0xf]
    %v555 = vld [vmem:[#allocation10 + $0x20] sm:$0xf]
    %v556 = vld [vmem:[#allocation10 + $0x24] sm:$0xf]
    %v557 = vld [vmem:[#allocation10 + $0x28] sm:$0xf]
    %v558 = vld [vmem:[#allocation10 + $0x2c] sm:$0xf]
    %v559 = vld [vmem:[#allocation10 + $0x30] sm:$0xf]
    %v560 = vld [vmem:[#allocation10 + $0x34] sm:$0xf]
    %v561 = vld [vmem:[#allocation10 + $0x38] sm:$0xf]
    %v562 = vld [vmem:[#allocation10 + $0x3c] sm:$0xf]
    %v563 = vpack.c.bf16 %v546, %v546
    %v564 = vld [vmem:[%s14] sm:$0x1]
    %v566 = vlaneseq
    %v567 = vshrl.u32 %v566, 7
    %v568 = vsub.s32 0, %v567
    %v569 = vrot.slane %v564, %v568
    %v587 = vunpack.c.l.b16 %v547
    %v588 = vunpack.c.l.b16 %v548
    %v589 = vunpack.c.l.b16 %v549
    %v590 = vunpack.c.l.b16 %v550
    %v591 = vunpack.c.l.b16 %v551
    %v592 = vunpack.c.l.b16 %v552
    %v593 = vunpack.c.l.b16 %v553
    %v594 = vunpack.c.l.b16 %v554
    %v595 = vunpack.c.l.b16 %v555
    %v596 = vunpack.c.l.b16 %v556
    %v597 = vunpack.c.l.b16 %v557
    %v598 = vunpack.c.l.b16 %v558
    %v599 = vunpack.c.l.b16 %v559
    %v600 = vunpack.c.l.b16 %v560
    %v601 = vunpack.c.l.b16 %v561
    %v602 = vunpack.c.l.b16 %v562
    %v603 = vpack.c.b16 %v588, %v587
    %v604 = vpack.c.b16 %v590, %v589
    %v605 = vpack.c.b16 %v592, %v591
    %v606 = vpack.c.b16 %v594, %v593
    %v607 = vpack.c.b16 %v596, %v595
    %v608 = vpack.c.b16 %v598, %v597
    %v609 = vpack.c.b16 %v600, %v599
    %v610 = vpack.c.b16 %v602, %v601
    %619 = vmatprep.subr.bf16.mxu0 0
    %620 = vmatpush1.bf16.msra.mxu0 %v603
    %621 = vmatprep.subr.bf16.mxu0 0
    %622 = vmatpush1.bf16.msra.mxu0 %v604
    %623 = vmatprep.subr.bf16.mxu0 0
    %624 = vmatpush1.bf16.msra.mxu0 %v605
    %625 = vmatprep.subr.bf16.mxu0 0
    %626 = vmatpush1.bf16.msra.mxu0 %v606
    %627 = vmatprep.subr.bf16.mxu0 0
    %628 = vmatpush1.bf16.msra.mxu0 %v607
    %629 = vmatprep.subr.bf16.mxu0 0
    %630 = vmatpush1.bf16.msra.mxu0 %v608
    %631 = vmatprep.subr.bf16.mxu0 0
    %632 = vmatpush1.bf16.msra.mxu0 %v609
    %633 = vmatprep.subr.bf16.mxu0 0
    %634 = vmatpush1.bf16.msra.mxu0 %v610
    %635 = vmatprep.subr.bf16.mxu0 0
    %636 = vmatpush1.bf16.msra.mxu0 0
    %637 = vmatprep.subr.bf16.mxu0 0
    %638 = vmatpush1.bf16.msra.mxu0 0
    %639 = vmatprep.subr.bf16.mxu0 0
    %640 = vmatpush1.bf16.msra.mxu0 0
    %641 = vmatprep.subr.bf16.mxu0 0
    %642 = vmatpush1.bf16.msra.mxu0 0
    %643 = vmatprep.subr.bf16.mxu0 0
    %644 = vmatpush1.bf16.msra.mxu0 0
    %645 = vmatprep.subr.bf16.mxu0 0
    %646 = vmatpush1.bf16.msra.mxu0 0
    %647 = vmatprep.subr.bf16.mxu0 0
    %648 = vmatpush1.bf16.msra.mxu0 0
    %649 = vmatprep.subr.bf16.mxu0 0
    %650 = vmatpush1.bf16.msra.mxu0 0
    %651 = vmatprep.mubr.bf16.mxu0 0
    %652 = vmatmul.mubr.bf16.gmra.mrb[0].mxu0 %v563
    %v653 = vpop.f32.mrb[0].mxu0
    %v654 = vadd.f32 %v569, %v653
    %v655 = vpop.f32.mrb[0].mxu0
    %v656 = vpop.f32.mrb[0].mxu0
    %v657 = vpop.f32.mrb[0].mxu0
    %658 = vdwg.mxu0
    %659 = vst [vmem:[#allocation11] sm:$0xff] %v654
    // Predicated region
    $region82: #{tpu_custom_call.1} parent=1 // pred_check
      _
    $region83: #{tpu_custom_call.1} parent=1 // pred_check_branch
      %661 = sbr.rel (0) target = $region85
    $region84: #{tpu_custom_call.1} parent=1 // pred_region
      %s663 = ssub.s32 128, 128
      %664 = vsyncadd [#allocation4], %s663
      %s666 = sshll.u32 [#allocation11], 4
      %s667 = int_to_ptr.vmem [resolvable:$true] %s666
      %669 = dma.vmem_to_hbm [thread:$0]  %s667, 128, %s15, [#allocation4]
    $region85: #{tpu_custom_call.1} parent=1 // pred_fallthru
      _
    // Predicated region
    $region86: #{tpu_custom_call.1} parent=1 // pred_check
      _
    $region87: #{tpu_custom_call.1} parent=1 // pred_check_branch
      %671 = sbr.rel (0) target = $region89
    $region88: #{tpu_custom_call.1} parent=1 // pred_region
      %672 = dma.done [#allocation4], 128
    $region89: #{tpu_custom_call.1} parent=1 // pred_fallthru
      _
    %673 = vsyncpa [#allocation3], 1
    %674 = vsyncpa [#allocation6], 1
    %675 = vsyncpa [#allocation9], 1
    %676 = vsyncpa [#allocation4], 1

</llo_original>
